<compile_context>
chip_gen: v7x
topology: tpu7x:2x2x1
jax: 0.10.0
libtpu: 0.0.40
codegen_flags: <defaults>
</compile_context>

<pallas_src>
import functools

import jax
import jax.numpy as jnp
from jax import lax
from jax.experimental import pallas as pl
from jax.experimental.pallas import tpu as pltpu


def _round_up(x, m):
    return (x + m - 1) // m * m


def _cond_lstm_kernel(x_ref, h0_ref, c0_ref, wh_ref, h_out_ref, c_out_ref,
                      h_s, c_s):
    """One grid step = T_CHUNK timesteps of the recurrence.

    x_ref   : (T_CHUNK, B_pad, 4*H_pad)  precomputed input projections
    h0_ref  : (B_pad, H_pad)             initial hidden state (batch-major)
    c0_ref  : (B_pad, H_pad)             initial cell state
    wh_ref  : (H_pad, 4*H_pad)           fused conditioned recurrence matrix
    h_out_ref / c_out_ref : (T_CHUNK, B_pad, H_pad) history (steps 1..T)
    h_s / c_s : VMEM carry across grid steps
    """
    hp = h_s.shape[-1]
    t_chunk = x_ref.shape[0]

    @pl.when(pl.program_id(0) == 0)
    def _init():
        h_s[...] = h0_ref[...]
        c_s[...] = c0_ref[...]

    def step(t, carry):
        # One fused lane-dense matmul: (B_pad, H_pad) @ (H_pad, 4*H_pad).
        pre = x_ref[t] + jnp.dot(h_s[...], wh_ref[...],
                                 preferred_element_type=jnp.float32)
        # Static, 128-aligned gate slices (views, no copies).
        it = jax.nn.sigmoid(pre[:, 0 * hp:1 * hp])
        ft = jax.nn.sigmoid(pre[:, 1 * hp:2 * hp])
        gt = jnp.tanh(pre[:, 2 * hp:3 * hp])
        ot = jax.nn.sigmoid(pre[:, 3 * hp:4 * hp])
        c_new = ft * c_s[...] + it * gt
        h_new = ot * jnp.tanh(c_new)
        c_s[...] = c_new
        h_s[...] = h_new
        h_out_ref[t] = h_new
        c_out_ref[t] = c_new
        return carry

    lax.fori_loop(0, t_chunk, step, 0, unroll=True)


@functools.partial(jax.jit, static_argnames=("t_chunk",))
def cond_lstm_forward(tnsr_input, h0, c0, tnsr_cond,
                      wei_F, wei_U, wei_V, wei_WI, *, t_chunk=8):
    """
    tnsr_input : (n_step, n_batch, n_input)
    h0, c0     : (n_hidden, n_batch)   (torch module convention)
    tnsr_cond  : (n_cond_dim,)
    wei_F      : (n_F, n_cond_dim)
    wei_U      : (4, n_hidden, n_F)
    wei_V      : (4, n_F, n_hidden)
    wei_WI     : (4, n_hidden, n_input)
    returns (h_all, c_all): each (n_step + 1, n_hidden, n_batch),
    index 0 = initial state (matching the torch module's h / c lists).
    """
    f32 = jnp.float32
    hi = lax.Precision.HIGHEST

    n_step, n_batch, n_input = tnsr_input.shape
    n_hidden = h0.shape[0]

    # Padded / chunked sizes for TPU alignment.
    Hp = _round_up(n_hidden, 128)          # lane dim multiple of 128
    Bp = _round_up(n_batch, 8)             # sublane dim multiple of 8
    Tc = max(1, min(t_chunk, n_step))      # timesteps per grid iteration
    Tp = _round_up(max(n_step, 1), Tc)
    n_chunks = Tp // Tc

    x = tnsr_input.astype(f32)

    # ---- conditioning precompute (wrapper, plain XLA, runs once) ----------
    fc = jnp.dot(wei_F.astype(f32), tnsr_cond.astype(f32).reshape(-1, 1),
                 precision=hi)                                   # (n_F, 1)
    # WH[g] = U[g] @ (fc * V[g])  ->  (4, H_out, H_in)
    wh = jnp.einsum('gof,gfh->goh', wei_U.astype(f32),
                    fc[None, :, :] * wei_V.astype(f32), precision=hi)
    wh_t = jnp.transpose(wh, (0, 2, 1))                          # (4, H_in, H_out)
    wh_t = jnp.pad(wh_t, ((0, 0), (0, Hp - n_hidden), (0, Hp - n_hidden)))
    wh_fused = jnp.transpose(wh_t, (1, 0, 2)).reshape(Hp, 4 * Hp)

    # ---- hoisted input projection for ALL timesteps (one big matmul) ------
    wi_t = jnp.transpose(wei_WI.astype(f32), (0, 2, 1))          # (4, In, H)
    wi_t = jnp.pad(wi_t, ((0, 0), (0, 0), (0, Hp - n_hidden)))
    wi_fused = jnp.transpose(wi_t, (1, 0, 2)).reshape(n_input, 4 * Hp)
    x_proj = jnp.einsum('tbi,ik->tbk', x, wi_fused, precision=hi)  # (T, B, 4Hp)
    x_proj = jnp.pad(x_proj,
                     ((0, Tp - n_step), (0, Bp - n_batch), (0, 0)))

    # Initial state, batch-major and padded.
    h0p = jnp.pad(h0.astype(f32).T, ((0, Bp - n_batch), (0, Hp - n_hidden)))
    c0p = jnp.pad(c0.astype(f32).T, ((0, Bp - n_batch), (0, Hp - n_hidden)))

    out_shape = (
        jax.ShapeDtypeStruct((Tp, Bp, Hp), f32),
        jax.ShapeDtypeStruct((Tp, Bp, Hp), f32),
    )

    grid_spec = pltpu.PrefetchScalarGridSpec(
        num_scalar_prefetch=0,
        grid=(n_chunks,),
        in_specs=[
            pl.BlockSpec((Tc, Bp, 4 * Hp), lambda i: (i, 0, 0)),   # x_proj chunk
            pl.BlockSpec((Bp, Hp), lambda i: (0, 0)),              # h0
            pl.BlockSpec((Bp, Hp), lambda i: (0, 0)),              # c0
            pl.BlockSpec((Hp, 4 * Hp), lambda i: (0, 0)),          # WH fused
        ],
        out_specs=[
            pl.BlockSpec((Tc, Bp, Hp), lambda i: (i, 0, 0)),       # h history
            pl.BlockSpec((Tc, Bp, Hp), lambda i: (i, 0, 0)),       # c history
        ],
        scratch_shapes=[
            pltpu.VMEM((Bp, Hp), f32),   # h carry
            pltpu.VMEM((Bp, Hp), f32),   # c carry
        ],
    )

    h_hist, c_hist = pl.pallas_call(
        _cond_lstm_kernel,
        out_shape=out_shape,
        grid_spec=grid_spec,
        compiler_params=pltpu.CompilerParams(
            dimension_semantics=("arbitrary",)),   # sequential recurrence
    )(x_proj, h0p, c0p, wh_fused)

    # Un-pad, restore torch layout (n_hidden, n_batch), prepend initial state.
    h_steps = jnp.transpose(h_hist[:n_step, :n_batch, :n_hidden], (0, 2, 1))
    c_steps = jnp.transpose(c_hist[:n_step, :n_batch, :n_hidden], (0, 2, 1))
    h_all = jnp.concatenate([h0.astype(f32)[None], h_steps], axis=0)
    c_all = jnp.concatenate([c0.astype(f32)[None], c_steps], axis=0)
    return h_all, c_all


def cond_lstm_reference(tnsr_input, h0, c0, tnsr_cond,
                        wei_F, wei_U, wei_V, wei_WI):
    """Plain-JAX replica of the torch forward (for verification)."""
    hi = lax.Precision.HIGHEST
    fc = jnp.dot(wei_F, tnsr_cond.reshape(-1, 1), precision=hi)     # (n_F, 1)
    WH = [jnp.dot(wei_U[i], fc * wei_V[i], precision=hi) for i in range(4)]
    h, c = h0, c0
    hs, cs = [h0], [c0]
    for t in range(tnsr_input.shape[0]):
        xT = tnsr_input[t].T
        it = jax.nn.sigmoid(jnp.dot(wei_WI[0], xT, precision=hi)
                            + jnp.dot(WH[0], h, precision=hi))
        ft = jax.nn.sigmoid(jnp.dot(wei_WI[1], xT, precision=hi)
                            + jnp.dot(WH[1], h, precision=hi))
        gt = jnp.tanh(jnp.dot(wei_WI[2], xT, precision=hi)
                      + jnp.dot(WH[2], h, precision=hi))
        ot = jax.nn.sigmoid(jnp.dot(wei_WI[3], xT, precision=hi)
                            + jnp.dot(WH[3], h, precision=hi))
        c = ft * c + it * gt
        h = ot * jnp.tanh(c)
        hs.append(h)
        cs.append(c)
    return jnp.stack(hs), jnp.stack(cs)


if __name__ == "__main__":
    # Small, deterministic configuration.
    n_step, n_batch = 8, 2
    n_input, n_hidden, n_F, n_cond_dim = 8, 32, 16, 4

    key = jax.random.PRNGKey(0)
    keys = jax.random.split(key, 8)
    # Module parameters (init.normal_(mean=0, std=1) equivalents).
    wei_F = jax.random.normal(keys[0], (n_F, n_cond_dim), jnp.float32)
    wei_U = jax.random.normal(keys[1], (4, n_hidden, n_F), jnp.float32)
    wei_V = jax.random.normal(keys[2], (4, n_F, n_hidden), jnp.float32)
    wei_WI = jax.random.normal(keys[3], (4, n_hidden, n_input), jnp.float32)

    # Forward inputs.
    tnsr_input = jax.random.normal(keys[4], (n_step, n_batch, n_input),
                                   jnp.float32)
    h0 = jax.random.normal(keys[5], (n_hidden, n_batch), jnp.float32)
    c0 = jax.random.normal(keys[6], (n_hidden, n_batch), jnp.float32)
    tnsr_cond = jax.random.normal(keys[7], (n_cond_dim,), jnp.float32)

    h_all, c_all = cond_lstm_forward(
        tnsr_input, h0, c0, tnsr_cond, wei_F, wei_U, wei_V, wei_WI,
        t_chunk=8)
    jax.block_until_ready((h_all, c_all))

    h_ref, c_ref = cond_lstm_reference(
        tnsr_input, h0, c0, tnsr_cond, wei_F, wei_U, wei_V, wei_WI)

    assert h_all.shape == (n_step + 1, n_hidden, n_batch)
    assert c_all.shape == (n_step + 1, n_hidden, n_batch)
    assert jnp.allclose(h_all, h_ref, atol=1e-3, rtol=1e-3), (
        float(jnp.max(jnp.abs(h_all - h_ref))))
    assert jnp.allclose(c_all, c_ref, atol=1e-3, rtol=1e-3), (
        float(jnp.max(jnp.abs(c_all - c_ref))))

    print("KERNEL_OK")
</pallas_src>

<mosaic_0001>
module attributes {stable_mosaic.version = 11 : i64} {
  func.func @_cond_lstm_kernel(%arg0: i32, %arg1: memref<8x8x512xf32, #tpu.memory_space<vmem>>, %arg2: memref<8x128xf32, #tpu.memory_space<vmem>>, %arg3: memref<8x128xf32, #tpu.memory_space<vmem>>, %arg4: memref<128x512xf32, #tpu.memory_space<vmem>>, %arg5: memref<8x8x128xf32, #tpu.memory_space<vmem>>, %arg6: memref<8x8x128xf32, #tpu.memory_space<vmem>>, %arg7: memref<8x128xf32, #tpu.memory_space<vmem>>, %arg8: memref<8x128xf32, #tpu.memory_space<vmem>>) attributes {dimension_semantics = [#tpu.dimension_semantics<arbitrary>], iteration_bounds = array<i64: 1>, scalar_prefetch = 0 : i64, scratch_operands = 2 : i64, tpu.core_type = #tpu.core_type<tc>, window_params = [{transform_indices = @transform_0, window_bounds = array<i64: 8, 8, 512>}, {pipeline_mode = #tpu.pipeline_mode<synchronous>, transform_indices = @transform_1, window_bounds = array<i64: 8, 128>}, {pipeline_mode = #tpu.pipeline_mode<synchronous>, transform_indices = @transform_2, window_bounds = array<i64: 8, 128>}, {pipeline_mode = #tpu.pipeline_mode<synchronous>, transform_indices = @transform_3, window_bounds = array<i64: 128, 512>}, {transform_indices = @transform_4, window_bounds = array<i64: 8, 8, 128>}, {transform_indices = @transform_5, window_bounds = array<i64: 8, 8, 128>}]} {
    %c0_i32 = arith.constant 0 : i32
    %0 = arith.cmpi eq, %arg0, %c0_i32 : i32
    %1 = arith.extui %0 : i1 to i32
    %c0_i32_0 = arith.constant 0 : i32
    %2 = arith.cmpi ne, %1, %c0_i32_0 : i32
    scf.if %2 {
      %c0_160 = arith.constant 0 : index
      %c0_161 = arith.constant 0 : index
      %347 = vector.load %arg2[%c0_160, %c0_161] : memref<8x128xf32, #tpu.memory_space<vmem>>, vector<8x128xf32>
      %c0_162 = arith.constant 0 : index
      %c0_163 = arith.constant 0 : index
      %348 = vector.load %arg7[%c0_162, %c0_163] : memref<8x128xf32, #tpu.memory_space<vmem>>, vector<8x128xf32>
      tpu.vector_store %arg7[%c0_162, %c0_163], %347 {strides = array<i32>} : memref<8x128xf32, #tpu.memory_space<vmem>>, vector<8x128xf32>,
      %c0_164 = arith.constant 0 : index
      %c0_165 = arith.constant 0 : index
      %349 = vector.load %arg3[%c0_164, %c0_165] : memref<8x128xf32, #tpu.memory_space<vmem>>, vector<8x128xf32>
      %c0_166 = arith.constant 0 : index
      %c0_167 = arith.constant 0 : index
      %350 = vector.load %arg8[%c0_166, %c0_167] : memref<8x128xf32, #tpu.memory_space<vmem>>, vector<8x128xf32>
      tpu.vector_store %arg8[%c0_166, %c0_167], %349 {strides = array<i32>} : memref<8x128xf32, #tpu.memory_space<vmem>>, vector<8x128xf32>,
    } else {
    }
    %c0_i32_1 = arith.constant 0 : i32
    %3 = arith.index_cast %c0_i32_1 : i32 to index
    %c0 = arith.constant 0 : index
    %c0_2 = arith.constant 0 : index
    %4 = vector.load %arg1[%3, %c0, %c0_2] : memref<8x8x512xf32, #tpu.memory_space<vmem>>, vector<1x8x512xf32>
    %5 = vector.shape_cast %4 : vector<1x8x512xf32> to vector<8x512xf32>
    %c0_3 = arith.constant 0 : index
    %c0_4 = arith.constant 0 : index
    %6 = vector.load %arg7[%c0_3, %c0_4] : memref<8x128xf32, #tpu.memory_space<vmem>>, vector<8x128xf32>
    %c0_5 = arith.constant 0 : index
    %c0_6 = arith.constant 0 : index
    %7 = vector.load %arg4[%c0_5, %c0_6] : memref<128x512xf32, #tpu.memory_space<vmem>>, vector<128x512xf32>
    %cst = arith.constant dense<0.000000e+00> : vector<8x512xf32>
    %8 = tpu.matmul %6, %7, %cst {dimension_numbers = #tpu.dot_dimension_numbers<[1], [0], [0], [1], [0, 0, 1, 1], [], []>} : vector<8x128xf32>, vector<128x512xf32>, vector<8x512xf32> -> vector<8x512xf32>
    %9 = arith.addf %5, %8 : vector<8x512xf32>
    %10 = vector.extract_strided_slice %9 {offsets = [0, 0], sizes = [8, 128], strides = [1, 1]} : vector<8x512xf32> to vector<8x128xf32>
    %11 = arith.negf %10 : vector<8x128xf32>
    %12 = math.exp %11 : vector<8x128xf32>
    %cst_7 = arith.constant 1.000000e+00 : f32
    %13 = vector.broadcast %cst_7 : f32 to vector<8x128xf32>
    %14 = arith.addf %13, %12 : vector<8x128xf32>
    %15 = arith.divf %13, %14 : vector<8x128xf32>
    %16 = vector.extract_strided_slice %9 {offsets = [0, 128], sizes = [8, 128], strides = [1, 1]} : vector<8x512xf32> to vector<8x128xf32>
    %17 = arith.negf %16 : vector<8x128xf32>
    %18 = math.exp %17 : vector<8x128xf32>
    %cst_8 = arith.constant 1.000000e+00 : f32
    %19 = vector.broadcast %cst_8 : f32 to vector<8x128xf32>
    %20 = arith.addf %19, %18 : vector<8x128xf32>
    %21 = arith.divf %19, %20 : vector<8x128xf32>
    %22 = vector.extract_strided_slice %9 {offsets = [0, 256], sizes = [8, 128], strides = [1, 1]} : vector<8x512xf32> to vector<8x128xf32>
    %23 = math.tanh %22 : vector<8x128xf32>
    %24 = vector.extract_strided_slice %9 {offsets = [0, 384], sizes = [8, 128], strides = [1, 1]} : vector<8x512xf32> to vector<8x128xf32>
    %25 = arith.negf %24 : vector<8x128xf32>
    %26 = math.exp %25 : vector<8x128xf32>
    %cst_9 = arith.constant 1.000000e+00 : f32
    %27 = vector.broadcast %cst_9 : f32 to vector<8x128xf32>
    %28 = arith.addf %27, %26 : vector<8x128xf32>
    %29 = arith.divf %27, %28 : vector<8x128xf32>
    %c0_10 = arith.constant 0 : index
    %c0_11 = arith.constant 0 : index
    %30 = vector.load %arg8[%c0_10, %c0_11] : memref<8x128xf32, #tpu.memory_space<vmem>>, vector<8x128xf32>
    %31 = arith.mulf %21, %30 : vector<8x128xf32>
    %32 = arith.mulf %15, %23 : vector<8x128xf32>
    %33 = arith.addf %31, %32 : vector<8x128xf32>
    %34 = math.tanh %33 : vector<8x128xf32>
    %35 = arith.mulf %29, %34 : vector<8x128xf32>
    %c0_12 = arith.constant 0 : index
    %c0_13 = arith.constant 0 : index
    %36 = vector.load %arg8[%c0_12, %c0_13] : memref<8x128xf32, #tpu.memory_space<vmem>>, vector<8x128xf32>
    tpu.vector_store %arg8[%c0_12, %c0_13], %33 {strides = array<i32>} : memref<8x128xf32, #tpu.memory_space<vmem>>, vector<8x128xf32>,
    %c0_14 = arith.constant 0 : index
    %c0_15 = arith.constant 0 : index
    %37 = vector.load %arg7[%c0_14, %c0_15] : memref<8x128xf32, #tpu.memory_space<vmem>>, vector<8x128xf32>
    tpu.vector_store %arg7[%c0_14, %c0_15], %35 {strides = array<i32>} : memref<8x128xf32, #tpu.memory_space<vmem>>, vector<8x128xf32>,
    %38 = arith.index_cast %c0_i32_1 : i32 to index
    %c0_16 = arith.constant 0 : index
    %c0_17 = arith.constant 0 : index
    %39 = vector.load %arg5[%38, %c0_16, %c0_17] : memref<8x8x128xf32, #tpu.memory_space<vmem>>, vector<1x8x128xf32>
    %40 = vector.shape_cast %39 : vector<1x8x128xf32> to vector<8x128xf32>
    %41 = vector.shape_cast %35 : vector<8x128xf32> to vector<1x8x128xf32>
    tpu.vector_store %arg5[%38, %c0_16, %c0_17], %41 {strides = array<i32>} : memref<8x8x128xf32, #tpu.memory_space<vmem>>, vector<1x8x128xf32>,
    %42 = arith.index_cast %c0_i32_1 : i32 to index
    %c0_18 = arith.constant 0 : index
    %c0_19 = arith.constant 0 : index
    %43 = vector.load %arg6[%42, %c0_18, %c0_19] : memref<8x8x128xf32, #tpu.memory_space<vmem>>, vector<1x8x128xf32>
    %44 = vector.shape_cast %43 : vector<1x8x128xf32> to vector<8x128xf32>
    %45 = vector.shape_cast %33 : vector<8x128xf32> to vector<1x8x128xf32>
    tpu.vector_store %arg6[%42, %c0_18, %c0_19], %45 {strides = array<i32>} : memref<8x8x128xf32, #tpu.memory_space<vmem>>, vector<1x8x128xf32>,
    %c1_i32 = arith.constant 1 : i32
    %46 = arith.index_cast %c1_i32 : i32 to index
    %c0_20 = arith.constant 0 : index
    %c0_21 = arith.constant 0 : index
    %47 = vector.load %arg1[%46, %c0_20, %c0_21] : memref<8x8x512xf32, #tpu.memory_space<vmem>>, vector<1x8x512xf32>
    %48 = vector.shape_cast %47 : vector<1x8x512xf32> to vector<8x512xf32>
    %c0_22 = arith.constant 0 : index
    %c0_23 = arith.constant 0 : index
    %49 = vector.load %arg7[%c0_22, %c0_23] : memref<8x128xf32, #tpu.memory_space<vmem>>, vector<8x128xf32>
    %c0_24 = arith.constant 0 : index
    %c0_25 = arith.constant 0 : index
    %50 = vector.load %arg4[%c0_24, %c0_25] : memref<128x512xf32, #tpu.memory_space<vmem>>, vector<128x512xf32>
    %cst_26 = arith.constant dense<0.000000e+00> : vector<8x512xf32>
    %51 = tpu.matmul %49, %50, %cst_26 {dimension_numbers = #tpu.dot_dimension_numbers<[1], [0], [0], [1], [0, 0, 1, 1], [], []>} : vector<8x128xf32>, vector<128x512xf32>, vector<8x512xf32> -> vector<8x512xf32>
    %52 = arith.addf %48, %51 : vector<8x512xf32>
    %53 = vector.extract_strided_slice %52 {offsets = [0, 0], sizes = [8, 128], strides = [1, 1]} : vector<8x512xf32> to vector<8x128xf32>
    %54 = arith.negf %53 : vector<8x128xf32>
    %55 = math.exp %54 : vector<8x128xf32>
    %cst_27 = arith.constant 1.000000e+00 : f32
    %56 = vector.broadcast %cst_27 : f32 to vector<8x128xf32>
    %57 = arith.addf %56, %55 : vector<8x128xf32>
    %58 = arith.divf %56, %57 : vector<8x128xf32>
    %59 = vector.extract_strided_slice %52 {offsets = [0, 128], sizes = [8, 128], strides = [1, 1]} : vector<8x512xf32> to vector<8x128xf32>
    %60 = arith.negf %59 : vector<8x128xf32>
    %61 = math.exp %60 : vector<8x128xf32>
    %cst_28 = arith.constant 1.000000e+00 : f32
    %62 = vector.broadcast %cst_28 : f32 to vector<8x128xf32>
    %63 = arith.addf %62, %61 : vector<8x128xf32>
    %64 = arith.divf %62, %63 : vector<8x128xf32>
    %65 = vector.extract_strided_slice %52 {offsets = [0, 256], sizes = [8, 128], strides = [1, 1]} : vector<8x512xf32> to vector<8x128xf32>
    %66 = math.tanh %65 : vector<8x128xf32>
    %67 = vector.extract_strided_slice %52 {offsets = [0, 384], sizes = [8, 128], strides = [1, 1]} : vector<8x512xf32> to vector<8x128xf32>
    %68 = arith.negf %67 : vector<8x128xf32>
    %69 = math.exp %68 : vector<8x128xf32>
    %cst_29 = arith.constant 1.000000e+00 : f32
    %70 = vector.broadcast %cst_29 : f32 to vector<8x128xf32>
    %71 = arith.addf %70, %69 : vector<8x128xf32>
    %72 = arith.divf %70, %71 : vector<8x128xf32>
    %c0_30 = arith.constant 0 : index
    %c0_31 = arith.constant 0 : index
    %73 = vector.load %arg8[%c0_30, %c0_31] : memref<8x128xf32, #tpu.memory_space<vmem>>, vector<8x128xf32>
    %74 = arith.mulf %64, %73 : vector<8x128xf32>
    %75 = arith.mulf %58, %66 : vector<8x128xf32>
    %76 = arith.addf %74, %75 : vector<8x128xf32>
    %77 = math.tanh %76 : vector<8x128xf32>
    %78 = arith.mulf %72, %77 : vector<8x128xf32>
    %c0_32 = arith.constant 0 : index
    %c0_33 = arith.constant 0 : index
    %79 = vector.load %arg8[%c0_32, %c0_33] : memref<8x128xf32, #tpu.memory_space<vmem>>, vector<8x128xf32>
    tpu.vector_store %arg8[%c0_32, %c0_33], %76 {strides = array<i32>} : memref<8x128xf32, #tpu.memory_space<vmem>>, vector<8x128xf32>,
    %c0_34 = arith.constant 0 : index
    %c0_35 = arith.constant 0 : index
    %80 = vector.load %arg7[%c0_34, %c0_35] : memref<8x128xf32, #tpu.memory_space<vmem>>, vector<8x128xf32>
    tpu.vector_store %arg7[%c0_34, %c0_35], %78 {strides = array<i32>} : memref<8x128xf32, #tpu.memory_space<vmem>>, vector<8x128xf32>,
    %81 = arith.index_cast %c1_i32 : i32 to index
    %c0_36 = arith.constant 0 : index
    %c0_37 = arith.constant 0 : index
    %82 = vector.load %arg5[%81, %c0_36, %c0_37] : memref<8x8x128xf32, #tpu.memory_space<vmem>>, vector<1x8x128xf32>
    %83 = vector.shape_cast %82 : vector<1x8x128xf32> to vector<8x128xf32>
    %84 = vector.shape_cast %78 : vector<8x128xf32> to vector<1x8x128xf32>
    tpu.vector_store %arg5[%81, %c0_36, %c0_37], %84 {strides = array<i32>} : memref<8x8x128xf32, #tpu.memory_space<vmem>>, vector<1x8x128xf32>,
    %85 = arith.index_cast %c1_i32 : i32 to index
    %c0_38 = arith.constant 0 : index
    %c0_39 = arith.constant 0 : index
    %86 = vector.load %arg6[%85, %c0_38, %c0_39] : memref<8x8x128xf32, #tpu.memory_space<vmem>>, vector<1x8x128xf32>
    %87 = vector.shape_cast %86 : vector<1x8x128xf32> to vector<8x128xf32>
    %88 = vector.shape_cast %76 : vector<8x128xf32> to vector<1x8x128xf32>
    tpu.vector_store %arg6[%85, %c0_38, %c0_39], %88 {strides = array<i32>} : memref<8x8x128xf32, #tpu.memory_space<vmem>>, vector<1x8x128xf32>,
    %c2_i32 = arith.constant 2 : i32
    %89 = arith.index_cast %c2_i32 : i32 to index
    %c0_40 = arith.constant 0 : index
    %c0_41 = arith.constant 0 : index
    %90 = vector.load %arg1[%89, %c0_40, %c0_41] : memref<8x8x512xf32, #tpu.memory_space<vmem>>, vector<1x8x512xf32>
    %91 = vector.shape_cast %90 : vector<1x8x512xf32> to vector<8x512xf32>
    %c0_42 = arith.constant 0 : index
    %c0_43 = arith.constant 0 : index
    %92 = vector.load %arg7[%c0_42, %c0_43] : memref<8x128xf32, #tpu.memory_space<vmem>>, vector<8x128xf32>
    %c0_44 = arith.constant 0 : index
    %c0_45 = arith.constant 0 : index
    %93 = vector.load %arg4[%c0_44, %c0_45] : memref<128x512xf32, #tpu.memory_space<vmem>>, vector<128x512xf32>
    %cst_46 = arith.constant dense<0.000000e+00> : vector<8x512xf32>
    %94 = tpu.matmul %92, %93, %cst_46 {dimension_numbers = #tpu.dot_dimension_numbers<[1], [0], [0], [1], [0, 0, 1, 1], [], []>} : vector<8x128xf32>, vector<128x512xf32>, vector<8x512xf32> -> vector<8x512xf32>
    %95 = arith.addf %91, %94 : vector<8x512xf32>
    %96 = vector.extract_strided_slice %95 {offsets = [0, 0], sizes = [8, 128], strides = [1, 1]} : vector<8x512xf32> to vector<8x128xf32>
    %97 = arith.negf %96 : vector<8x128xf32>
    %98 = math.exp %97 : vector<8x128xf32>
    %cst_47 = arith.constant 1.000000e+00 : f32
    %99 = vector.broadcast %cst_47 : f32 to vector<8x128xf32>
    %100 = arith.addf %99, %98 : vector<8x128xf32>
    %101 = arith.divf %99, %100 : vector<8x128xf32>
    %102 = vector.extract_strided_slice %95 {offsets = [0, 128], sizes = [8, 128], strides = [1, 1]} : vector<8x512xf32> to vector<8x128xf32>
    %103 = arith.negf %102 : vector<8x128xf32>
    %104 = math.exp %103 : vector<8x128xf32>
    %cst_48 = arith.constant 1.000000e+00 : f32
    %105 = vector.broadcast %cst_48 : f32 to vector<8x128xf32>
    %106 = arith.addf %105, %104 : vector<8x128xf32>
    %107 = arith.divf %105, %106 : vector<8x128xf32>
    %108 = vector.extract_strided_slice %95 {offsets = [0, 256], sizes = [8, 128], strides = [1, 1]} : vector<8x512xf32> to vector<8x128xf32>
    %109 = math.tanh %108 : vector<8x128xf32>
    %110 = vector.extract_strided_slice %95 {offsets = [0, 384], sizes = [8, 128], strides = [1, 1]} : vector<8x512xf32> to vector<8x128xf32>
    %111 = arith.negf %110 : vector<8x128xf32>
    %112 = math.exp %111 : vector<8x128xf32>
    %cst_49 = arith.constant 1.000000e+00 : f32
    %113 = vector.broadcast %cst_49 : f32 to vector<8x128xf32>
    %114 = arith.addf %113, %112 : vector<8x128xf32>
    %115 = arith.divf %113, %114 : vector<8x128xf32>
    %c0_50 = arith.constant 0 : index
    %c0_51 = arith.constant 0 : index
    %116 = vector.load %arg8[%c0_50, %c0_51] : memref<8x128xf32, #tpu.memory_space<vmem>>, vector<8x128xf32>
    %117 = arith.mulf %107, %116 : vector<8x128xf32>
    %118 = arith.mulf %101, %109 : vector<8x128xf32>
    %119 = arith.addf %117, %118 : vector<8x128xf32>
    %120 = math.tanh %119 : vector<8x128xf32>
    %121 = arith.mulf %115, %120 : vector<8x128xf32>
    %c0_52 = arith.constant 0 : index
    %c0_53 = arith.constant 0 : index
    %122 = vector.load %arg8[%c0_52, %c0_53] : memref<8x128xf32, #tpu.memory_space<vmem>>, vector<8x128xf32>
    tpu.vector_store %arg8[%c0_52, %c0_53], %119 {strides = array<i32>} : memref<8x128xf32, #tpu.memory_space<vmem>>, vector<8x128xf32>,
    %c0_54 = arith.constant 0 : index
    %c0_55 = arith.constant 0 : index
    %123 = vector.load %arg7[%c0_54, %c0_55] : memref<8x128xf32, #tpu.memory_space<vmem>>, vector<8x128xf32>
    tpu.vector_store %arg7[%c0_54, %c0_55], %121 {strides = array<i32>} : memref<8x128xf32, #tpu.memory_space<vmem>>, vector<8x128xf32>,
    %124 = arith.index_cast %c2_i32 : i32 to index
    %c0_56 = arith.constant 0 : index
    %c0_57 = arith.constant 0 : index
    %125 = vector.load %arg5[%124, %c0_56, %c0_57] : memref<8x8x128xf32, #tpu.memory_space<vmem>>, vector<1x8x128xf32>
    %126 = vector.shape_cast %125 : vector<1x8x128xf32> to vector<8x128xf32>
    %127 = vector.shape_cast %121 : vector<8x128xf32> to vector<1x8x128xf32>
    tpu.vector_store %arg5[%124, %c0_56, %c0_57], %127 {strides = array<i32>} : memref<8x8x128xf32, #tpu.memory_space<vmem>>, vector<1x8x128xf32>,
    %128 = arith.index_cast %c2_i32 : i32 to index
    %c0_58 = arith.constant 0 : index
    %c0_59 = arith.constant 0 : index
    %129 = vector.load %arg6[%128, %c0_58, %c0_59] : memref<8x8x128xf32, #tpu.memory_space<vmem>>, vector<1x8x128xf32>
    %130 = vector.shape_cast %129 : vector<1x8x128xf32> to vector<8x128xf32>
    %131 = vector.shape_cast %119 : vector<8x128xf32> to vector<1x8x128xf32>
    tpu.vector_store %arg6[%128, %c0_58, %c0_59], %131 {strides = array<i32>} : memref<8x8x128xf32, #tpu.memory_space<vmem>>, vector<1x8x128xf32>,
    %c3_i32 = arith.constant 3 : i32
    %132 = arith.index_cast %c3_i32 : i32 to index
    %c0_60 = arith.constant 0 : index
    %c0_61 = arith.constant 0 : index
    %133 = vector.load %arg1[%132, %c0_60, %c0_61] : memref<8x8x512xf32, #tpu.memory_space<vmem>>, vector<1x8x512xf32>
    %134 = vector.shape_cast %133 : vector<1x8x512xf32> to vector<8x512xf32>
    %c0_62 = arith.constant 0 : index
    %c0_63 = arith.constant 0 : index
    %135 = vector.load %arg7[%c0_62, %c0_63] : memref<8x128xf32, #tpu.memory_space<vmem>>, vector<8x128xf32>
    %c0_64 = arith.constant 0 : index
    %c0_65 = arith.constant 0 : index
    %136 = vector.load %arg4[%c0_64, %c0_65] : memref<128x512xf32, #tpu.memory_space<vmem>>, vector<128x512xf32>
    %cst_66 = arith.constant dense<0.000000e+00> : vector<8x512xf32>
    %137 = tpu.matmul %135, %136, %cst_66 {dimension_numbers = #tpu.dot_dimension_numbers<[1], [0], [0], [1], [0, 0, 1, 1], [], []>} : vector<8x128xf32>, vector<128x512xf32>, vector<8x512xf32> -> vector<8x512xf32>
    %138 = arith.addf %134, %137 : vector<8x512xf32>
    %139 = vector.extract_strided_slice %138 {offsets = [0, 0], sizes = [8, 128], strides = [1, 1]} : vector<8x512xf32> to vector<8x128xf32>
    %140 = arith.negf %139 : vector<8x128xf32>
    %141 = math.exp %140 : vector<8x128xf32>
    %cst_67 = arith.constant 1.000000e+00 : f32
    %142 = vector.broadcast %cst_67 : f32 to vector<8x128xf32>
    %143 = arith.addf %142, %141 : vector<8x128xf32>
    %144 = arith.divf %142, %143 : vector<8x128xf32>
    %145 = vector.extract_strided_slice %138 {offsets = [0, 128], sizes = [8, 128], strides = [1, 1]} : vector<8x512xf32> to vector<8x128xf32>
    %146 = arith.negf %145 : vector<8x128xf32>
    %147 = math.exp %146 : vector<8x128xf32>
    %cst_68 = arith.constant 1.000000e+00 : f32
    %148 = vector.broadcast %cst_68 : f32 to vector<8x128xf32>
    %149 = arith.addf %148, %147 : vector<8x128xf32>
    %150 = arith.divf %148, %149 : vector<8x128xf32>
    %151 = vector.extract_strided_slice %138 {offsets = [0, 256], sizes = [8, 128], strides = [1, 1]} : vector<8x512xf32> to vector<8x128xf32>
    %152 = math.tanh %151 : vector<8x128xf32>
    %153 = vector.extract_strided_slice %138 {offsets = [0, 384], sizes = [8, 128], strides = [1, 1]} : vector<8x512xf32> to vector<8x128xf32>
    %154 = arith.negf %153 : vector<8x128xf32>
    %155 = math.exp %154 : vector<8x128xf32>
    %cst_69 = arith.constant 1.000000e+00 : f32
    %156 = vector.broadcast %cst_69 : f32 to vector<8x128xf32>
    %157 = arith.addf %156, %155 : vector<8x128xf32>
    %158 = arith.divf %156, %157 : vector<8x128xf32>
    %c0_70 = arith.constant 0 : index
    %c0_71 = arith.constant 0 : index
    %159 = vector.load %arg8[%c0_70, %c0_71] : memref<8x128xf32, #tpu.memory_space<vmem>>, vector<8x128xf32>
    %160 = arith.mulf %150, %159 : vector<8x128xf32>
    %161 = arith.mulf %144, %152 : vector<8x128xf32>
    %162 = arith.addf %160, %161 : vector<8x128xf32>
    %163 = math.tanh %162 : vector<8x128xf32>
    %164 = arith.mulf %158, %163 : vector<8x128xf32>
    %c0_72 = arith.constant 0 : index
    %c0_73 = arith.constant 0 : index
    %165 = vector.load %arg8[%c0_72, %c0_73] : memref<8x128xf32, #tpu.memory_space<vmem>>, vector<8x128xf32>
    tpu.vector_store %arg8[%c0_72, %c0_73], %162 {strides = array<i32>} : memref<8x128xf32, #tpu.memory_space<vmem>>, vector<8x128xf32>,
    %c0_74 = arith.constant 0 : index
    %c0_75 = arith.constant 0 : index
    %166 = vector.load %arg7[%c0_74, %c0_75] : memref<8x128xf32, #tpu.memory_space<vmem>>, vector<8x128xf32>
    tpu.vector_store %arg7[%c0_74, %c0_75], %164 {strides = array<i32>} : memref<8x128xf32, #tpu.memory_space<vmem>>, vector<8x128xf32>,
    %167 = arith.index_cast %c3_i32 : i32 to index
    %c0_76 = arith.constant 0 : index
    %c0_77 = arith.constant 0 : index
    %168 = vector.load %arg5[%167, %c0_76, %c0_77] : memref<8x8x128xf32, #tpu.memory_space<vmem>>, vector<1x8x128xf32>
    %169 = vector.shape_cast %168 : vector<1x8x128xf32> to vector<8x128xf32>
    %170 = vector.shape_cast %164 : vector<8x128xf32> to vector<1x8x128xf32>
    tpu.vector_store %arg5[%167, %c0_76, %c0_77], %170 {strides = array<i32>} : memref<8x8x128xf32, #tpu.memory_space<vmem>>, vector<1x8x128xf32>,
    %171 = arith.index_cast %c3_i32 : i32 to index
    %c0_78 = arith.constant 0 : index
    %c0_79 = arith.constant 0 : index
    %172 = vector.load %arg6[%171, %c0_78, %c0_79] : memref<8x8x128xf32, #tpu.memory_space<vmem>>, vector<1x8x128xf32>
    %173 = vector.shape_cast %172 : vector<1x8x128xf32> to vector<8x128xf32>
    %174 = vector.shape_cast %162 : vector<8x128xf32> to vector<1x8x128xf32>
    tpu.vector_store %arg6[%171, %c0_78, %c0_79], %174 {strides = array<i32>} : memref<8x8x128xf32, #tpu.memory_space<vmem>>, vector<1x8x128xf32>,
    %c4_i32 = arith.constant 4 : i32
    %175 = arith.index_cast %c4_i32 : i32 to index
    %c0_80 = arith.constant 0 : index
    %c0_81 = arith.constant 0 : index
    %176 = vector.load %arg1[%175, %c0_80, %c0_81] : memref<8x8x512xf32, #tpu.memory_space<vmem>>, vector<1x8x512xf32>
    %177 = vector.shape_cast %176 : vector<1x8x512xf32> to vector<8x512xf32>
    %c0_82 = arith.constant 0 : index
    %c0_83 = arith.constant 0 : index
    %178 = vector.load %arg7[%c0_82, %c0_83] : memref<8x128xf32, #tpu.memory_space<vmem>>, vector<8x128xf32>
    %c0_84 = arith.constant 0 : index
    %c0_85 = arith.constant 0 : index
    %179 = vector.load %arg4[%c0_84, %c0_85] : memref<128x512xf32, #tpu.memory_space<vmem>>, vector<128x512xf32>
    %cst_86 = arith.constant dense<0.000000e+00> : vector<8x512xf32>
    %180 = tpu.matmul %178, %179, %cst_86 {dimension_numbers = #tpu.dot_dimension_numbers<[1], [0], [0], [1], [0, 0, 1, 1], [], []>} : vector<8x128xf32>, vector<128x512xf32>, vector<8x512xf32> -> vector<8x512xf32>
    %181 = arith.addf %177, %180 : vector<8x512xf32>
    %182 = vector.extract_strided_slice %181 {offsets = [0, 0], sizes = [8, 128], strides = [1, 1]} : vector<8x512xf32> to vector<8x128xf32>
    %183 = arith.negf %182 : vector<8x128xf32>
    %184 = math.exp %183 : vector<8x128xf32>
    %cst_87 = arith.constant 1.000000e+00 : f32
    %185 = vector.broadcast %cst_87 : f32 to vector<8x128xf32>
    %186 = arith.addf %185, %184 : vector<8x128xf32>
    %187 = arith.divf %185, %186 : vector<8x128xf32>
    %188 = vector.extract_strided_slice %181 {offsets = [0, 128], sizes = [8, 128], strides = [1, 1]} : vector<8x512xf32> to vector<8x128xf32>
    %189 = arith.negf %188 : vector<8x128xf32>
    %190 = math.exp %189 : vector<8x128xf32>
    %cst_88 = arith.constant 1.000000e+00 : f32
    %191 = vector.broadcast %cst_88 : f32 to vector<8x128xf32>
    %192 = arith.addf %191, %190 : vector<8x128xf32>
    %193 = arith.divf %191, %192 : vector<8x128xf32>
    %194 = vector.extract_strided_slice %181 {offsets = [0, 256], sizes = [8, 128], strides = [1, 1]} : vector<8x512xf32> to vector<8x128xf32>
    %195 = math.tanh %194 : vector<8x128xf32>
    %196 = vector.extract_strided_slice %181 {offsets = [0, 384], sizes = [8, 128], strides = [1, 1]} : vector<8x512xf32> to vector<8x128xf32>
    %197 = arith.negf %196 : vector<8x128xf32>
    %198 = math.exp %197 : vector<8x128xf32>
    %cst_89 = arith.constant 1.000000e+00 : f32
    %199 = vector.broadcast %cst_89 : f32 to vector<8x128xf32>
    %200 = arith.addf %199, %198 : vector<8x128xf32>
    %201 = arith.divf %199, %200 : vector<8x128xf32>
    %c0_90 = arith.constant 0 : index
    %c0_91 = arith.constant 0 : index
    %202 = vector.load %arg8[%c0_90, %c0_91] : memref<8x128xf32, #tpu.memory_space<vmem>>, vector<8x128xf32>
    %203 = arith.mulf %193, %202 : vector<8x128xf32>
    %204 = arith.mulf %187, %195 : vector<8x128xf32>
    %205 = arith.addf %203, %204 : vector<8x128xf32>
    %206 = math.tanh %205 : vector<8x128xf32>
    %207 = arith.mulf %201, %206 : vector<8x128xf32>
    %c0_92 = arith.constant 0 : index
    %c0_93 = arith.constant 0 : index
    %208 = vector.load %arg8[%c0_92, %c0_93] : memref<8x128xf32, #tpu.memory_space<vmem>>, vector<8x128xf32>
    tpu.vector_store %arg8[%c0_92, %c0_93], %205 {strides = array<i32>} : memref<8x128xf32, #tpu.memory_space<vmem>>, vector<8x128xf32>,
    %c0_94 = arith.constant 0 : index
    %c0_95 = arith.constant 0 : index
    %209 = vector.load %arg7[%c0_94, %c0_95] : memref<8x128xf32, #tpu.memory_space<vmem>>, vector<8x128xf32>
    tpu.vector_store %arg7[%c0_94, %c0_95], %207 {strides = array<i32>} : memref<8x128xf32, #tpu.memory_space<vmem>>, vector<8x128xf32>,
    %210 = arith.index_cast %c4_i32 : i32 to index
    %c0_96 = arith.constant 0 : index
    %c0_97 = arith.constant 0 : index
    %211 = vector.load %arg5[%210, %c0_96, %c0_97] : memref<8x8x128xf32, #tpu.memory_space<vmem>>, vector<1x8x128xf32>
    %212 = vector.shape_cast %211 : vector<1x8x128xf32> to vector<8x128xf32>
    %213 = vector.shape_cast %207 : vector<8x128xf32> to vector<1x8x128xf32>
    tpu.vector_store %arg5[%210, %c0_96, %c0_97], %213 {strides = array<i32>} : memref<8x8x128xf32, #tpu.memory_space<vmem>>, vector<1x8x128xf32>,
    %214 = arith.index_cast %c4_i32 : i32 to index
    %c0_98 = arith.constant 0 : index
    %c0_99 = arith.constant 0 : index
    %215 = vector.load %arg6[%214, %c0_98, %c0_99] : memref<8x8x128xf32, #tpu.memory_space<vmem>>, vector<1x8x128xf32>
    %216 = vector.shape_cast %215 : vector<1x8x128xf32> to vector<8x128xf32>
    %217 = vector.shape_cast %205 : vector<8x128xf32> to vector<1x8x128xf32>
    tpu.vector_store %arg6[%214, %c0_98, %c0_99], %217 {strides = array<i32>} : memref<8x8x128xf32, #tpu.memory_space<vmem>>, vector<1x8x128xf32>,
    %c5_i32 = arith.constant 5 : i32
    %218 = arith.index_cast %c5_i32 : i32 to index
    %c0_100 = arith.constant 0 : index
    %c0_101 = arith.constant 0 : index
    %219 = vector.load %arg1[%218, %c0_100, %c0_101] : memref<8x8x512xf32, #tpu.memory_space<vmem>>, vector<1x8x512xf32>
    %220 = vector.shape_cast %219 : vector<1x8x512xf32> to vector<8x512xf32>
    %c0_102 = arith.constant 0 : index
    %c0_103 = arith.constant 0 : index
    %221 = vector.load %arg7[%c0_102, %c0_103] : memref<8x128xf32, #tpu.memory_space<vmem>>, vector<8x128xf32>
    %c0_104 = arith.constant 0 : index
    %c0_105 = arith.constant 0 : index
    %222 = vector.load %arg4[%c0_104, %c0_105] : memref<128x512xf32, #tpu.memory_space<vmem>>, vector<128x512xf32>
    %cst_106 = arith.constant dense<0.000000e+00> : vector<8x512xf32>
    %223 = tpu.matmul %221, %222, %cst_106 {dimension_numbers = #tpu.dot_dimension_numbers<[1], [0], [0], [1], [0, 0, 1, 1], [], []>} : vector<8x128xf32>, vector<128x512xf32>, vector<8x512xf32> -> vector<8x512xf32>
    %224 = arith.addf %220, %223 : vector<8x512xf32>
    %225 = vector.extract_strided_slice %224 {offsets = [0, 0], sizes = [8, 128], strides = [1, 1]} : vector<8x512xf32> to vector<8x128xf32>
    %226 = arith.negf %225 : vector<8x128xf32>
    %227 = math.exp %226 : vector<8x128xf32>
    %cst_107 = arith.constant 1.000000e+00 : f32
    %228 = vector.broadcast %cst_107 : f32 to vector<8x128xf32>
    %229 = arith.addf %228, %227 : vector<8x128xf32>
    %230 = arith.divf %228, %229 : vector<8x128xf32>
    %231 = vector.extract_strided_slice %224 {offsets = [0, 128], sizes = [8, 128], strides = [1, 1]} : vector<8x512xf32> to vector<8x128xf32>
    %232 = arith.negf %231 : vector<8x128xf32>
    %233 = math.exp %232 : vector<8x128xf32>
    %cst_108 = arith.constant 1.000000e+00 : f32
    %234 = vector.broadcast %cst_108 : f32 to vector<8x128xf32>
    %235 = arith.addf %234, %233 : vector<8x128xf32>
    %236 = arith.divf %234, %235 : vector<8x128xf32>
    %237 = vector.extract_strided_slice %224 {offsets = [0, 256], sizes = [8, 128], strides = [1, 1]} : vector<8x512xf32> to vector<8x128xf32>
    %238 = math.tanh %237 : vector<8x128xf32>
    %239 = vector.extract_strided_slice %224 {offsets = [0, 384], sizes = [8, 128], strides = [1, 1]} : vector<8x512xf32> to vector<8x128xf32>
    %240 = arith.negf %239 : vector<8x128xf32>
    %241 = math.exp %240 : vector<8x128xf32>
    %cst_109 = arith.constant 1.000000e+00 : f32
    %242 = vector.broadcast %cst_109 : f32 to vector<8x128xf32>
    %243 = arith.addf %242, %241 : vector<8x128xf32>
    %244 = arith.divf %242, %243 : vector<8x128xf32>
    %c0_110 = arith.constant 0 : index
    %c0_111 = arith.constant 0 : index
    %245 = vector.load %arg8[%c0_110, %c0_111] : memref<8x128xf32, #tpu.memory_space<vmem>>, vector<8x128xf32>
    %246 = arith.mulf %236, %245 : vector<8x128xf32>
    %247 = arith.mulf %230, %238 : vector<8x128xf32>
    %248 = arith.addf %246, %247 : vector<8x128xf32>
    %249 = math.tanh %248 : vector<8x128xf32>
    %250 = arith.mulf %244, %249 : vector<8x128xf32>
    %c0_112 = arith.constant 0 : index
    %c0_113 = arith.constant 0 : index
    %251 = vector.load %arg8[%c0_112, %c0_113] : memref<8x128xf32, #tpu.memory_space<vmem>>, vector<8x128xf32>
    tpu.vector_store %arg8[%c0_112, %c0_113], %248 {strides = array<i32>} : memref<8x128xf32, #tpu.memory_space<vmem>>, vector<8x128xf32>,
    %c0_114 = arith.constant 0 : index
    %c0_115 = arith.constant 0 : index
    %252 = vector.load %arg7[%c0_114, %c0_115] : memref<8x128xf32, #tpu.memory_space<vmem>>, vector<8x128xf32>
    tpu.vector_store %arg7[%c0_114, %c0_115], %250 {strides = array<i32>} : memref<8x128xf32, #tpu.memory_space<vmem>>, vector<8x128xf32>,
    %253 = arith.index_cast %c5_i32 : i32 to index
    %c0_116 = arith.constant 0 : index
    %c0_117 = arith.constant 0 : index
    %254 = vector.load %arg5[%253, %c0_116, %c0_117] : memref<8x8x128xf32, #tpu.memory_space<vmem>>, vector<1x8x128xf32>
    %255 = vector.shape_cast %254 : vector<1x8x128xf32> to vector<8x128xf32>
    %256 = vector.shape_cast %250 : vector<8x128xf32> to vector<1x8x128xf32>
    tpu.vector_store %arg5[%253, %c0_116, %c0_117], %256 {strides = array<i32>} : memref<8x8x128xf32, #tpu.memory_space<vmem>>, vector<1x8x128xf32>,
    %257 = arith.index_cast %c5_i32 : i32 to index
    %c0_118 = arith.constant 0 : index
    %c0_119 = arith.constant 0 : index
    %258 = vector.load %arg6[%257, %c0_118, %c0_119] : memref<8x8x128xf32, #tpu.memory_space<vmem>>, vector<1x8x128xf32>
    %259 = vector.shape_cast %258 : vector<1x8x128xf32> to vector<8x128xf32>
    %260 = vector.shape_cast %248 : vector<8x128xf32> to vector<1x8x128xf32>
    tpu.vector_store %arg6[%257, %c0_118, %c0_119], %260 {strides = array<i32>} : memref<8x8x128xf32, #tpu.memory_space<vmem>>, vector<1x8x128xf32>,
    %c6_i32 = arith.constant 6 : i32
    %261 = arith.index_cast %c6_i32 : i32 to index
    %c0_120 = arith.constant 0 : index
    %c0_121 = arith.constant 0 : index
    %262 = vector.load %arg1[%261, %c0_120, %c0_121] : memref<8x8x512xf32, #tpu.memory_space<vmem>>, vector<1x8x512xf32>
    %263 = vector.shape_cast %262 : vector<1x8x512xf32> to vector<8x512xf32>
    %c0_122 = arith.constant 0 : index
    %c0_123 = arith.constant 0 : index
    %264 = vector.load %arg7[%c0_122, %c0_123] : memref<8x128xf32, #tpu.memory_space<vmem>>, vector<8x128xf32>
    %c0_124 = arith.constant 0 : index
    %c0_125 = arith.constant 0 : index
    %265 = vector.load %arg4[%c0_124, %c0_125] : memref<128x512xf32, #tpu.memory_space<vmem>>, vector<128x512xf32>
    %cst_126 = arith.constant dense<0.000000e+00> : vector<8x512xf32>
    %266 = tpu.matmul %264, %265, %cst_126 {dimension_numbers = #tpu.dot_dimension_numbers<[1], [0], [0], [1], [0, 0, 1, 1], [], []>} : vector<8x128xf32>, vector<128x512xf32>, vector<8x512xf32> -> vector<8x512xf32>
    %267 = arith.addf %263, %266 : vector<8x512xf32>
    %268 = vector.extract_strided_slice %267 {offsets = [0, 0], sizes = [8, 128], strides = [1, 1]} : vector<8x512xf32> to vector<8x128xf32>
    %269 = arith.negf %268 : vector<8x128xf32>
    %270 = math.exp %269 : vector<8x128xf32>
    %cst_127 = arith.constant 1.000000e+00 : f32
    %271 = vector.broadcast %cst_127 : f32 to vector<8x128xf32>
    %272 = arith.addf %271, %270 : vector<8x128xf32>
    %273 = arith.divf %271, %272 : vector<8x128xf32>
    %274 = vector.extract_strided_slice %267 {offsets = [0, 128], sizes = [8, 128], strides = [1, 1]} : vector<8x512xf32> to vector<8x128xf32>
    %275 = arith.negf %274 : vector<8x128xf32>
    %276 = math.exp %275 : vector<8x128xf32>
    %cst_128 = arith.constant 1.000000e+00 : f32
    %277 = vector.broadcast %cst_128 : f32 to vector<8x128xf32>
    %278 = arith.addf %277, %276 : vector<8x128xf32>
    %279 = arith.divf %277, %278 : vector<8x128xf32>
    %280 = vector.extract_strided_slice %267 {offsets = [0, 256], sizes = [8, 128], strides = [1, 1]} : vector<8x512xf32> to vector<8x128xf32>
    %281 = math.tanh %280 : vector<8x128xf32>
    %282 = vector.extract_strided_slice %267 {offsets = [0, 384], sizes = [8, 128], strides = [1, 1]} : vector<8x512xf32> to vector<8x128xf32>
    %283 = arith.negf %282 : vector<8x128xf32>
    %284 = math.exp %283 : vector<8x128xf32>
    %cst_129 = arith.constant 1.000000e+00 : f32
    %285 = vector.broadcast %cst_129 : f32 to vector<8x128xf32>
    %286 = arith.addf %285, %284 : vector<8x128xf32>
    %287 = arith.divf %285, %286 : vector<8x128xf32>
    %c0_130 = arith.constant 0 : index
    %c0_131 = arith.constant 0 : index
    %288 = vector.load %arg8[%c0_130, %c0_131] : memref<8x128xf32, #tpu.memory_space<vmem>>, vector<8x128xf32>
    %289 = arith.mulf %279, %288 : vector<8x128xf32>
    %290 = arith.mulf %273, %281 : vector<8x128xf32>
    %291 = arith.addf %289, %290 : vector<8x128xf32>
    %292 = math.tanh %291 : vector<8x128xf32>
    %293 = arith.mulf %287, %292 : vector<8x128xf32>
    %c0_132 = arith.constant 0 : index
    %c0_133 = arith.constant 0 : index
    %294 = vector.load %arg8[%c0_132, %c0_133] : memref<8x128xf32, #tpu.memory_space<vmem>>, vector<8x128xf32>
    tpu.vector_store %arg8[%c0_132, %c0_133], %291 {strides = array<i32>} : memref<8x128xf32, #tpu.memory_space<vmem>>, vector<8x128xf32>,
    %c0_134 = arith.constant 0 : index
    %c0_135 = arith.constant 0 : index
    %295 = vector.load %arg7[%c0_134, %c0_135] : memref<8x128xf32, #tpu.memory_space<vmem>>, vector<8x128xf32>
    tpu.vector_store %arg7[%c0_134, %c0_135], %293 {strides = array<i32>} : memref<8x128xf32, #tpu.memory_space<vmem>>, vector<8x128xf32>,
    %296 = arith.index_cast %c6_i32 : i32 to index
    %c0_136 = arith.constant 0 : index
    %c0_137 = arith.constant 0 : index
    %297 = vector.load %arg5[%296, %c0_136, %c0_137] : memref<8x8x128xf32, #tpu.memory_space<vmem>>, vector<1x8x128xf32>
    %298 = vector.shape_cast %297 : vector<1x8x128xf32> to vector<8x128xf32>
    %299 = vector.shape_cast %293 : vector<8x128xf32> to vector<1x8x128xf32>
    tpu.vector_store %arg5[%296, %c0_136, %c0_137], %299 {strides = array<i32>} : memref<8x8x128xf32, #tpu.memory_space<vmem>>, vector<1x8x128xf32>,
    %300 = arith.index_cast %c6_i32 : i32 to index
    %c0_138 = arith.constant 0 : index
    %c0_139 = arith.constant 0 : index
    %301 = vector.load %arg6[%300, %c0_138, %c0_139] : memref<8x8x128xf32, #tpu.memory_space<vmem>>, vector<1x8x128xf32>
    %302 = vector.shape_cast %301 : vector<1x8x128xf32> to vector<8x128xf32>
    %303 = vector.shape_cast %291 : vector<8x128xf32> to vector<1x8x128xf32>
    tpu.vector_store %arg6[%300, %c0_138, %c0_139], %303 {strides = array<i32>} : memref<8x8x128xf32, #tpu.memory_space<vmem>>, vector<1x8x128xf32>,
    %c7_i32 = arith.constant 7 : i32
    %304 = arith.index_cast %c7_i32 : i32 to index
    %c0_140 = arith.constant 0 : index
    %c0_141 = arith.constant 0 : index
    %305 = vector.load %arg1[%304, %c0_140, %c0_141] : memref<8x8x512xf32, #tpu.memory_space<vmem>>, vector<1x8x512xf32>
    %306 = vector.shape_cast %305 : vector<1x8x512xf32> to vector<8x512xf32>
    %c0_142 = arith.constant 0 : index
    %c0_143 = arith.constant 0 : index
    %307 = vector.load %arg7[%c0_142, %c0_143] : memref<8x128xf32, #tpu.memory_space<vmem>>, vector<8x128xf32>
    %c0_144 = arith.constant 0 : index
    %c0_145 = arith.constant 0 : index
    %308 = vector.load %arg4[%c0_144, %c0_145] : memref<128x512xf32, #tpu.memory_space<vmem>>, vector<128x512xf32>
    %cst_146 = arith.constant dense<0.000000e+00> : vector<8x512xf32>
    %309 = tpu.matmul %307, %308, %cst_146 {dimension_numbers = #tpu.dot_dimension_numbers<[1], [0], [0], [1], [0, 0, 1, 1], [], []>} : vector<8x128xf32>, vector<128x512xf32>, vector<8x512xf32> -> vector<8x512xf32>
    %310 = arith.addf %306, %309 : vector<8x512xf32>
    %311 = vector.extract_strided_slice %310 {offsets = [0, 0], sizes = [8, 128], strides = [1, 1]} : vector<8x512xf32> to vector<8x128xf32>
    %312 = arith.negf %311 : vector<8x128xf32>
    %313 = math.exp %312 : vector<8x128xf32>
    %cst_147 = arith.constant 1.000000e+00 : f32
    %314 = vector.broadcast %cst_147 : f32 to vector<8x128xf32>
    %315 = arith.addf %314, %313 : vector<8x128xf32>
    %316 = arith.divf %314, %315 : vector<8x128xf32>
    %317 = vector.extract_strided_slice %310 {offsets = [0, 128], sizes = [8, 128], strides = [1, 1]} : vector<8x512xf32> to vector<8x128xf32>
    %318 = arith.negf %317 : vector<8x128xf32>
    %319 = math.exp %318 : vector<8x128xf32>
    %cst_148 = arith.constant 1.000000e+00 : f32
    %320 = vector.broadcast %cst_148 : f32 to vector<8x128xf32>
    %321 = arith.addf %320, %319 : vector<8x128xf32>
    %322 = arith.divf %320, %321 : vector<8x128xf32>
    %323 = vector.extract_strided_slice %310 {offsets = [0, 256], sizes = [8, 128], strides = [1, 1]} : vector<8x512xf32> to vector<8x128xf32>
    %324 = math.tanh %323 : vector<8x128xf32>
    %325 = vector.extract_strided_slice %310 {offsets = [0, 384], sizes = [8, 128], strides = [1, 1]} : vector<8x512xf32> to vector<8x128xf32>
    %326 = arith.negf %325 : vector<8x128xf32>
    %327 = math.exp %326 : vector<8x128xf32>
    %cst_149 = arith.constant 1.000000e+00 : f32
    %328 = vector.broadcast %cst_149 : f32 to vector<8x128xf32>
    %329 = arith.addf %328, %327 : vector<8x128xf32>
    %330 = arith.divf %328, %329 : vector<8x128xf32>
    %c0_150 = arith.constant 0 : index
    %c0_151 = arith.constant 0 : index
    %331 = vector.load %arg8[%c0_150, %c0_151] : memref<8x128xf32, #tpu.memory_space<vmem>>, vector<8x128xf32>
    %332 = arith.mulf %322, %331 : vector<8x128xf32>
    %333 = arith.mulf %316, %324 : vector<8x128xf32>
    %334 = arith.addf %332, %333 : vector<8x128xf32>
    %335 = math.tanh %334 : vector<8x128xf32>
    %336 = arith.mulf %330, %335 : vector<8x128xf32>
    %c0_152 = arith.constant 0 : index
    %c0_153 = arith.constant 0 : index
    %337 = vector.load %arg8[%c0_152, %c0_153] : memref<8x128xf32, #tpu.memory_space<vmem>>, vector<8x128xf32>
    tpu.vector_store %arg8[%c0_152, %c0_153], %334 {strides = array<i32>} : memref<8x128xf32, #tpu.memory_space<vmem>>, vector<8x128xf32>,
    %c0_154 = arith.constant 0 : index
    %c0_155 = arith.constant 0 : index
    %338 = vector.load %arg7[%c0_154, %c0_155] : memref<8x128xf32, #tpu.memory_space<vmem>>, vector<8x128xf32>
    tpu.vector_store %arg7[%c0_154, %c0_155], %336 {strides = array<i32>} : memref<8x128xf32, #tpu.memory_space<vmem>>, vector<8x128xf32>,
    %339 = arith.index_cast %c7_i32 : i32 to index
    %c0_156 = arith.constant 0 : index
    %c0_157 = arith.constant 0 : index
    %340 = vector.load %arg5[%339, %c0_156, %c0_157] : memref<8x8x128xf32, #tpu.memory_space<vmem>>, vector<1x8x128xf32>
    %341 = vector.shape_cast %340 : vector<1x8x128xf32> to vector<8x128xf32>
    %342 = vector.shape_cast %336 : vector<8x128xf32> to vector<1x8x128xf32>
    tpu.vector_store %arg5[%339, %c0_156, %c0_157], %342 {strides = array<i32>} : memref<8x8x128xf32, #tpu.memory_space<vmem>>, vector<1x8x128xf32>,
    %343 = arith.index_cast %c7_i32 : i32 to index
    %c0_158 = arith.constant 0 : index
    %c0_159 = arith.constant 0 : index
    %344 = vector.load %arg6[%343, %c0_158, %c0_159] : memref<8x8x128xf32, #tpu.memory_space<vmem>>, vector<1x8x128xf32>
    %345 = vector.shape_cast %344 : vector<1x8x128xf32> to vector<8x128xf32>
    %346 = vector.shape_cast %334 : vector<8x128xf32> to vector<1x8x128xf32>
    tpu.vector_store %arg6[%343, %c0_158, %c0_159], %346 {strides = array<i32>} : memref<8x8x128xf32, #tpu.memory_space<vmem>>, vector<1x8x128xf32>,
    %c8_i32 = arith.constant 8 : i32
    return
  }
  func.func @transform_0(%arg0: i32) -> (i32, i32, i32) {
    %c0_i32 = arith.constant 0 : i32
    %c0_i32_0 = arith.constant 0 : i32
    %c0_i32_1 = arith.constant 0 : i32
    return %arg0, %c0_i32, %c0_i32_0 : i32, i32, i32
  }
  func.func @transform_1(%arg0: i32) -> (i32, i32) {
    %c0_i32 = arith.constant 0 : i32
    %c0_i32_0 = arith.constant 0 : i32
    %c0_i32_1 = arith.constant 0 : i32
    return %c0_i32, %c0_i32_0 : i32, i32
  }
  func.func @transform_2(%arg0: i32) -> (i32, i32) {
    %c0_i32 = arith.constant 0 : i32
    %c0_i32_0 = arith.constant 0 : i32
    %c0_i32_1 = arith.constant 0 : i32
    return %c0_i32, %c0_i32_0 : i32, i32
  }
  func.func @transform_3(%arg0: i32) -> (i32, i32) {
    %c0_i32 = arith.constant 0 : i32
    %c0_i32_0 = arith.constant 0 : i32
    %c0_i32_1 = arith.constant 0 : i32
    return %c0_i32, %c0_i32_0 : i32, i32
  }
  func.func @transform_4(%arg0: i32) -> (i32, i32, i32) {
    %c0_i32 = arith.constant 0 : i32
    %c0_i32_0 = arith.constant 0 : i32
    %c0_i32_1 = arith.constant 0 : i32
    return %arg0, %c0_i32, %c0_i32_0 : i32, i32, i32
  }
  func.func @transform_5(%arg0: i32) -> (i32, i32, i32) {
    %c0_i32 = arith.constant 0 : i32
    %c0_i32_0 = arith.constant 0 : i32
    %c0_i32_1 = arith.constant 0 : i32
    return %arg0, %c0_i32, %c0_i32_0 : i32, i32, i32
  }
}

</mosaic_0001>

<llo_original>
// kernel: cond_lstm_forward.1
$region0: #{cond_lstm_forward.1}
  #allocation0 [shape = 'u32[]', space=smem, size = 0x4, offset = 0x4, fixed_abs, tag = 'smem constant byte address 0x4 - core index']
  #allocation1 [shape = 'u32[144,128]{1,0:T(1,128)}', space=vmem, size = 0x12000, scoped, tag = 'internal scratch']
  #allocation2 [shape = 'f32[8,128]{1,0:T(8,128)}', space=vmem, size = 0x1000, scoped, tag = 'scratch operand']
  #allocation3 [shape = 'f32[8,128]{1,0:T(8,128)}', space=vmem, size = 0x1000, scoped, tag = 'scratch operand']
  %s0 = inlined_call_operand.vmem [shape: f32[8,8,512], index: 0, kind: input, shape index: {}]
  %s1 = inlined_call_operand.vmem [shape: f32[8,128], index: 1, kind: input, shape index: {}]
  %s2 = inlined_call_operand.vmem [shape: f32[8,128], index: 2, kind: input, shape index: {}]
  %s3 = inlined_call_operand.vmem [shape: f32[128,512], index: 3, kind: input, shape index: {}]
  %s4 = inlined_call_operand.vmem [shape: f32[8,8,128], index: 4, kind: output, shape index: {0}]
  %s5 = inlined_call_operand.vmem [shape: f32[8,8,128], index: 5, kind: output, shape index: {1}]
  %6 = xla_tuple %s4, %s5
  %s7 = sld [smem:[#allocation0]]
  $region38: #{cond_lstm_forward.1} parent=0
    _
  %s9 = ssub.s32 1, %s7
  %s10 = scalar_select 0, %s9, %s7
  // Predicated region
  $region2: #{cond_lstm_forward.1} parent=0 // pred_check
    _
  $region3: #{cond_lstm_forward.1} parent=0 // pred_check_branch
    %12 = sbr.rel (0) target = $region5
  $region4: #{cond_lstm_forward.1} parent=0 // pred_region
    _
  $region5: #{cond_lstm_forward.1} parent=0 // pred_fallthru
    _
  // Predicated region
  $region6: #{cond_lstm_forward.1} parent=0 // pred_check
    _
  $region7: #{cond_lstm_forward.1} parent=0 // pred_check_branch
    %14 = sbr.rel (0) target = $region9
  $region8: #{cond_lstm_forward.1} parent=0 // pred_region
    _
  $region9: #{cond_lstm_forward.1} parent=0 // pred_fallthru
    _
  // Predicated region
  $region10: #{cond_lstm_forward.1} parent=0 // pred_check
    _
  $region11: #{cond_lstm_forward.1} parent=0 // pred_check_branch
    %16 = sbr.rel (0) target = $region13
  $region12: #{cond_lstm_forward.1} parent=0 // pred_region
    _
  $region13: #{cond_lstm_forward.1} parent=0 // pred_fallthru
    _
  // Predicated region
  $region14: #{cond_lstm_forward.1} parent=0 // pred_check
    _
  $region15: #{cond_lstm_forward.1} parent=0 // pred_check_branch
    %18 = sbr.rel (0) target = $region17
  $region16: #{cond_lstm_forward.1} parent=0 // pred_region
    _
  $region17: #{cond_lstm_forward.1} parent=0 // pred_fallthru
    _
  %p19 = scmp.eq.s32.totalorder 0, 0
  // Predicated region
  $region18: #{cond_lstm_forward.1} parent=0 // pred_check
    %p20 = pneg %p19
  $region19: #{cond_lstm_forward.1} parent=0 // pred_check_branch
    %22 = sbr.rel (%p20) target = $region21
  $region20: #{cond_lstm_forward.1} parent=0 // pred_region
    %v23 = vld [vmem:[%s1] sm:$0xff]
    %24 = vst [vmem:[#allocation2] sm:$0xff] %v23
    %v25 = vld [vmem:[%s2] sm:$0xff]
    %26 = vst [vmem:[#allocation3] sm:$0xff] %v25
  $region21: #{cond_lstm_forward.1} parent=0 // pred_fallthru
    _
  %v27 = vld [vmem:[%s0] sm:$0xff]
  %v28 = vld [vmem:[%s0 + $0x8] sm:$0xff]
  %v29 = vld [vmem:[%s0 + $0x10] sm:$0xff]
  %v30 = vld [vmem:[%s0 + $0x18] sm:$0xff]
  %v31 = vld [vmem:[#allocation2] sm:$0xff]
  %v32 = vld [vmem:[%s3] sm:$0xff]
  %v33 = vld [vmem:[%s3 + $0x8] sm:$0xff]
  %v34 = vld [vmem:[%s3 + $0x10] sm:$0xff]
  %v35 = vld [vmem:[%s3 + $0x18] sm:$0xff]
  %v36 = vld [vmem:[%s3 + $0x20] sm:$0xff]
  %v37 = vld [vmem:[%s3 + $0x28] sm:$0xff]
  %v38 = vld [vmem:[%s3 + $0x30] sm:$0xff]
  %v39 = vld [vmem:[%s3 + $0x38] sm:$0xff]
  %v40 = vld [vmem:[%s3 + $0x40] sm:$0xff]
  %v41 = vld [vmem:[%s3 + $0x48] sm:$0xff]
  %v42 = vld [vmem:[%s3 + $0x50] sm:$0xff]
  %v43 = vld [vmem:[%s3 + $0x58] sm:$0xff]
  %v44 = vld [vmem:[%s3 + $0x60] sm:$0xff]
  %v45 = vld [vmem:[%s3 + $0x68] sm:$0xff]
  %v46 = vld [vmem:[%s3 + $0x70] sm:$0xff]
  %v47 = vld [vmem:[%s3 + $0x78] sm:$0xff]
  %v48 = vld [vmem:[%s3 + $0x80] sm:$0xff]
  %v49 = vld [vmem:[%s3 + $0x88] sm:$0xff]
  %v50 = vld [vmem:[%s3 + $0x90] sm:$0xff]
  %v51 = vld [vmem:[%s3 + $0x98] sm:$0xff]
  %v52 = vld [vmem:[%s3 + $0xa0] sm:$0xff]
  %v53 = vld [vmem:[%s3 + $0xa8] sm:$0xff]
  %v54 = vld [vmem:[%s3 + $0xb0] sm:$0xff]
  %v55 = vld [vmem:[%s3 + $0xb8] sm:$0xff]
  %v56 = vld [vmem:[%s3 + $0xc0] sm:$0xff]
  %v57 = vld [vmem:[%s3 + $0xc8] sm:$0xff]
  %v58 = vld [vmem:[%s3 + $0xd0] sm:$0xff]
  %v59 = vld [vmem:[%s3 + $0xd8] sm:$0xff]
  %v60 = vld [vmem:[%s3 + $0xe0] sm:$0xff]
  %v61 = vld [vmem:[%s3 + $0xe8] sm:$0xff]
  %v62 = vld [vmem:[%s3 + $0xf0] sm:$0xff]
  %v63 = vld [vmem:[%s3 + $0xf8] sm:$0xff]
  %v64 = vld [vmem:[%s3 + $0x100] sm:$0xff]
  %v65 = vld [vmem:[%s3 + $0x108] sm:$0xff]
  %v66 = vld [vmem:[%s3 + $0x110] sm:$0xff]
  %v67 = vld [vmem:[%s3 + $0x118] sm:$0xff]
  %v68 = vld [vmem:[%s3 + $0x120] sm:$0xff]
  %v69 = vld [vmem:[%s3 + $0x128] sm:$0xff]
  %v70 = vld [vmem:[%s3 + $0x130] sm:$0xff]
  %v71 = vld [vmem:[%s3 + $0x138] sm:$0xff]
  %v72 = vld [vmem:[%s3 + $0x140] sm:$0xff]
  %v73 = vld [vmem:[%s3 + $0x148] sm:$0xff]
  %v74 = vld [vmem:[%s3 + $0x150] sm:$0xff]
  %v75 = vld [vmem:[%s3 + $0x158] sm:$0xff]
  %v76 = vld [vmem:[%s3 + $0x160] sm:$0xff]
  %v77 = vld [vmem:[%s3 + $0x168] sm:$0xff]
  %v78 = vld [vmem:[%s3 + $0x170] sm:$0xff]
  %v79 = vld [vmem:[%s3 + $0x178] sm:$0xff]
  %v80 = vld [vmem:[%s3 + $0x180] sm:$0xff]
  %v81 = vld [vmem:[%s3 + $0x188] sm:$0xff]
  %v82 = vld [vmem:[%s3 + $0x190] sm:$0xff]
  %v83 = vld [vmem:[%s3 + $0x198] sm:$0xff]
  %v84 = vld [vmem:[%s3 + $0x1a0] sm:$0xff]
  %v85 = vld [vmem:[%s3 + $0x1a8] sm:$0xff]
  %v86 = vld [vmem:[%s3 + $0x1b0] sm:$0xff]
  %v87 = vld [vmem:[%s3 + $0x1b8] sm:$0xff]
  %v88 = vld [vmem:[%s3 + $0x1c0] sm:$0xff]
  %v89 = vld [vmem:[%s3 + $0x1c8] sm:$0xff]
  %v90 = vld [vmem:[%s3 + $0x1d0] sm:$0xff]
  %v91 = vld [vmem:[%s3 + $0x1d8] sm:$0xff]
  %v92 = vld [vmem:[%s3 + $0x1e0] sm:$0xff]
  %v93 = vld [vmem:[%s3 + $0x1e8] sm:$0xff]
  %v94 = vld [vmem:[%s3 + $0x1f0] sm:$0xff]
  %v95 = vld [vmem:[%s3 + $0x1f8] sm:$0xff]
  %96 = vmatprep.subr.mxu0 %v33
  %97 = vmatpush1.msra.mxu0 %v32
  %98 = vmatprep.subr.mxu0 %v37
  %99 = vmatpush1.msra.mxu0 %v36
  %100 = vmatprep.subr.mxu0 %v41
  %101 = vmatpush1.msra.mxu0 %v40
  %102 = vmatprep.subr.mxu0 %v45
  %103 = vmatpush1.msra.mxu0 %v44
  %104 = vmatprep.subr.mxu0 %v49
  %105 = vmatpush1.msra.mxu0 %v48
  %106 = vmatprep.subr.mxu0 %v53
  %107 = vmatpush1.msra.mxu0 %v52
  %108 = vmatprep.subr.mxu0 %v57
  %109 = vmatpush1.msra.mxu0 %v56
  %110 = vmatprep.subr.mxu0 %v61
  %111 = vmatpush1.msra.mxu0 %v60
  %112 = vmatprep.subr.mxu0 %v65
  %113 = vmatpush1.msra.mxu0 %v64
  %114 = vmatprep.subr.mxu0 %v69
  %115 = vmatpush1.msra.mxu0 %v68
  %116 = vmatprep.subr.mxu0 %v73
  %117 = vmatpush1.msra.mxu0 %v72
  %118 = vmatprep.subr.mxu0 %v77
  %119 = vmatpush1.msra.mxu0 %v76
  %120 = vmatprep.subr.mxu0 %v81
  %121 = vmatpush1.msra.mxu0 %v80
  %122 = vmatprep.subr.mxu0 %v85
  %123 = vmatpush1.msra.mxu0 %v84
  %124 = vmatprep.subr.mxu0 %v89
  %125 = vmatpush1.msra.mxu0 %v88
  %126 = vmatprep.subr.mxu0 %v93
  %127 = vmatpush1.msra.mxu0 %v92
  %128 = vmatprep.subr.mxu0 0.0
  %129 = vmatpush1.msra.mxu0 0.0
  %130 = vmatprep.subr.mxu0 0.0
  %131 = vmatpush1.msra.mxu0 0.0
  %132 = vmatprep.subr.mxu0 0.0
  %133 = vmatpush1.msra.mxu0 0.0
  %134 = vmatprep.subr.mxu0 0.0
  %135 = vmatpush1.msra.mxu0 0.0
  %136 = vmatprep.subr.mxu0 0.0
  %137 = vmatpush1.msra.mxu0 0.0
  %138 = vmatprep.subr.mxu0 0.0
  %139 = vmatpush1.msra.mxu0 0.0
  %140 = vmatprep.subr.mxu0 0.0
  %141 = vmatpush1.msra.mxu0 0.0
  %142 = vmatprep.subr.mxu0 0.0
  %143 = vmatpush1.msra.mxu0 0.0
  %144 = vmatprep.subr.mxu0 0.0
  %145 = vmatpush1.msra.mxu0 0.0
  %146 = vmatprep.subr.mxu0 0.0
  %147 = vmatpush1.msra.mxu0 0.0
  %148 = vmatprep.subr.mxu0 0.0
  %149 = vmatpush1.msra.mxu0 0.0
  %150 = vmatprep.subr.mxu0 0.0
  %151 = vmatpush1.msra.mxu0 0.0
  %152 = vmatprep.subr.mxu0 0.0
  %153 = vmatpush1.msra.mxu0 0.0
  %154 = vmatprep.subr.mxu0 0.0
  %155 = vmatpush1.msra.mxu0 0.0
  %156 = vmatprep.subr.mxu0 0.0
  %157 = vmatpush1.msra.mxu0 0.0
  %158 = vmatprep.subr.mxu0 0.0
  %159 = vmatpush1.msra.mxu0 0.0
  %160 = vmatprep.mubr.f32.mxu0 0.0
  %161 = vmatmul.mubr.f32.gmra.mrb[0].mxu0 %v31
  %v162 = vpop.f32.mrb[0].mxu0
  %v163 = vadd.f32 0.0, %v162
  %v164 = vpop.f32.mrb[0].mxu0
  %v165 = vadd.f32 0.0, %v164
  %166 = vdwg.mxu0
  %167 = vmatprep.subr.mxu0 %v35
  %168 = vmatpush1.msra.mxu0 %v34
  %169 = vmatprep.subr.mxu0 %v39
  %170 = vmatpush1.msra.mxu0 %v38
  %171 = vmatprep.subr.mxu0 %v43
  %172 = vmatpush1.msra.mxu0 %v42
  %173 = vmatprep.subr.mxu0 %v47
  %174 = vmatpush1.msra.mxu0 %v46
  %175 = vmatprep.subr.mxu0 %v51
  %176 = vmatpush1.msra.mxu0 %v50
  %177 = vmatprep.subr.mxu0 %v55
  %178 = vmatpush1.msra.mxu0 %v54
  %179 = vmatprep.subr.mxu0 %v59
  %180 = vmatpush1.msra.mxu0 %v58
  %181 = vmatprep.subr.mxu0 %v63
  %182 = vmatpush1.msra.mxu0 %v62
  %183 = vmatprep.subr.mxu0 %v67
  %184 = vmatpush1.msra.mxu0 %v66
  %185 = vmatprep.subr.mxu0 %v71
  %186 = vmatpush1.msra.mxu0 %v70
  %187 = vmatprep.subr.mxu0 %v75
  %188 = vmatpush1.msra.mxu0 %v74
  %189 = vmatprep.subr.mxu0 %v79
  %190 = vmatpush1.msra.mxu0 %v78
  %191 = vmatprep.subr.mxu0 %v83
  %192 = vmatpush1.msra.mxu0 %v82
  %193 = vmatprep.subr.mxu0 %v87
  %194 = vmatpush1.msra.mxu0 %v86
  %195 = vmatprep.subr.mxu0 %v91
  %196 = vmatpush1.msra.mxu0 %v90
  %197 = vmatprep.subr.mxu0 %v95
  %198 = vmatpush1.msra.mxu0 %v94
  %199 = vmatprep.subr.mxu0 0.0
  %200 = vmatpush1.msra.mxu0 0.0
  %201 = vmatprep.subr.mxu0 0.0
  %202 = vmatpush1.msra.mxu0 0.0
  %203 = vmatprep.subr.mxu0 0.0
  %204 = vmatpush1.msra.mxu0 0.0
  %205 = vmatprep.subr.mxu0 0.0
  %206 = vmatpush1.msra.mxu0 0.0
  %207 = vmatprep.subr.mxu0 0.0
  %208 = vmatpush1.msra.mxu0 0.0
  %209 = vmatprep.subr.mxu0 0.0
  %210 = vmatpush1.msra.mxu0 0.0
  %211 = vmatprep.subr.mxu0 0.0
  %212 = vmatpush1.msra.mxu0 0.0
  %213 = vmatprep.subr.mxu0 0.0
  %214 = vmatpush1.msra.mxu0 0.0
  %215 = vmatprep.subr.mxu0 0.0
  %216 = vmatpush1.msra.mxu0 0.0
  %217 = vmatprep.subr.mxu0 0.0
  %218 = vmatpush1.msra.mxu0 0.0
  %219 = vmatprep.subr.mxu0 0.0
  %220 = vmatpush1.msra.mxu0 0.0
  %221 = vmatprep.subr.mxu0 0.0
  %222 = vmatpush1.msra.mxu0 0.0
  %223 = vmatprep.subr.mxu0 0.0
  %224 = vmatpush1.msra.mxu0 0.0
  %225 = vmatprep.subr.mxu0 0.0
  %226 = vmatpush1.msra.mxu0 0.0
  %227 = vmatprep.subr.mxu0 0.0
  %228 = vmatpush1.msra.mxu0 0.0
  %229 = vmatprep.subr.mxu0 0.0
  %230 = vmatpush1.msra.mxu0 0.0
  %231 = vmatprep.mubr.f32.mxu0 0.0
  %232 = vmatmul.mubr.f32.gmra.mrb[0].mxu0 %v31
  %v233 = vpop.f32.mrb[0].mxu0
  %v234 = vadd.f32 0.0, %v233
  %v235 = vpop.f32.mrb[0].mxu0
  %v236 = vadd.f32 0.0, %v235
  %237 = vdwg.mxu0
  %v238 = vadd.f32 %v27, %v163
  %v239 = vadd.f32 %v28, %v165
  %v240 = vadd.f32 %v29, %v234
  %v241 = vadd.f32 %v30, %v236
  %v242 = vxor.u32 %v238, 2147483648
  %v243 = vmul.f32 %v242, 1.442695
  %v244 = vpow.pop %v243
  %v245 = vadd.f32 %v244, 1.0
  %v246 = vrcp.pop %v245
  %v247 = vmul.f32 1.0, %v246
  %v248 = vxor.u32 %v239, 2147483648
  %v249 = vmul.f32 %v248, 1.442695
  %v250 = vpow.pop %v249
  %v251 = vadd.f32 %v250, 1.0
  %v252 = vrcp.pop %v251
  %v253 = vmul.f32 1.0, %v252
  %v254 = vtanh.pop %v240
  %v255 = vxor.u32 %v241, 2147483648
  %v256 = vmul.f32 %v255, 1.442695
  %v257 = vpow.pop %v256
  %v258 = vadd.f32 %v257, 1.0
  %v259 = vrcp.pop %v258
  %v260 = vmul.f32 1.0, %v259
  %v261 = vld [vmem:[#allocation3] sm:$0xff]
  %v262 = vmul.f32 %v253, %v261
  %v263 = vmul.f32 %v247, %v254
  %v264 = vadd.f32 %v262, %v263
  %v265 = vtanh.pop %v264
  %v266 = vmul.f32 %v260, %v265
  %267 = vst [vmem:[#allocation3] sm:$0xff] %v264
  %268 = vst [vmem:[#allocation2] sm:$0xff] %v266
  %269 = vst [vmem:[%s4] sm:$0xff] %v266
  %270 = vst [vmem:[%s5] sm:$0xff] %v264
  %s271 = scalar_lea.vmem %s0, 32
  %v272 = vld [vmem:[%s271] sm:$0xff]
  %v273 = vld [vmem:[%s271 + $0x8] sm:$0xff]
  %v274 = vld [vmem:[%s271 + $0x10] sm:$0xff]
  %v275 = vld [vmem:[%s271 + $0x18] sm:$0xff]
  %v276 = vld [vmem:[#allocation2] sm:$0xff]
  %v277 = vld [vmem:[%s3] sm:$0xff]
  %v278 = vld [vmem:[%s3 + $0x8] sm:$0xff]
  %v279 = vld [vmem:[%s3 + $0x10] sm:$0xff]
  %v280 = vld [vmem:[%s3 + $0x18] sm:$0xff]
  %v281 = vld [vmem:[%s3 + $0x20] sm:$0xff]
  %v282 = vld [vmem:[%s3 + $0x28] sm:$0xff]
  %v283 = vld [vmem:[%s3 + $0x30] sm:$0xff]
  %v284 = vld [vmem:[%s3 + $0x38] sm:$0xff]
  %v285 = vld [vmem:[%s3 + $0x40] sm:$0xff]
  %v286 = vld [vmem:[%s3 + $0x48] sm:$0xff]
  %v287 = vld [vmem:[%s3 + $0x50] sm:$0xff]
  %v288 = vld [vmem:[%s3 + $0x58] sm:$0xff]
  %v289 = vld [vmem:[%s3 + $0x60] sm:$0xff]
  %v290 = vld [vmem:[%s3 + $0x68] sm:$0xff]
  %v291 = vld [vmem:[%s3 + $0x70] sm:$0xff]
  %v292 = vld [vmem:[%s3 + $0x78] sm:$0xff]
  %v293 = vld [vmem:[%s3 + $0x80] sm:$0xff]
  %v294 = vld [vmem:[%s3 + $0x88] sm:$0xff]
  %v295 = vld [vmem:[%s3 + $0x90] sm:$0xff]
  %v296 = vld [vmem:[%s3 + $0x98] sm:$0xff]
  %v297 = vld [vmem:[%s3 + $0xa0] sm:$0xff]
  %v298 = vld [vmem:[%s3 + $0xa8] sm:$0xff]
  %v299 = vld [vmem:[%s3 + $0xb0] sm:$0xff]
  %v300 = vld [vmem:[%s3 + $0xb8] sm:$0xff]
  %v301 = vld [vmem:[%s3 + $0xc0] sm:$0xff]
  %v302 = vld [vmem:[%s3 + $0xc8] sm:$0xff]
  %v303 = vld [vmem:[%s3 + $0xd0] sm:$0xff]
  %v304 = vld [vmem:[%s3 + $0xd8] sm:$0xff]
  %v305 = vld [vmem:[%s3 + $0xe0] sm:$0xff]
  %v306 = vld [vmem:[%s3 + $0xe8] sm:$0xff]
  %v307 = vld [vmem:[%s3 + $0xf0] sm:$0xff]
  %v308 = vld [vmem:[%s3 + $0xf8] sm:$0xff]
  %v309 = vld [vmem:[%s3 + $0x100] sm:$0xff]
  %v310 = vld [vmem:[%s3 + $0x108] sm:$0xff]
  %v311 = vld [vmem:[%s3 + $0x110] sm:$0xff]
  %v312 = vld [vmem:[%s3 + $0x118] sm:$0xff]
  %v313 = vld [vmem:[%s3 + $0x120] sm:$0xff]
  %v314 = vld [vmem:[%s3 + $0x128] sm:$0xff]
  %v315 = vld [vmem:[%s3 + $0x130] sm:$0xff]
  %v316 = vld [vmem:[%s3 + $0x138] sm:$0xff]
  %v317 = vld [vmem:[%s3 + $0x140] sm:$0xff]
  %v318 = vld [vmem:[%s3 + $0x148] sm:$0xff]
  %v319 = vld [vmem:[%s3 + $0x150] sm:$0xff]
  %v320 = vld [vmem:[%s3 + $0x158] sm:$0xff]
  %v321 = vld [vmem:[%s3 + $0x160] sm:$0xff]
  %v322 = vld [vmem:[%s3 + $0x168] sm:$0xff]
  %v323 = vld [vmem:[%s3 + $0x170] sm:$0xff]
  %v324 = vld [vmem:[%s3 + $0x178] sm:$0xff]
  %v325 = vld [vmem:[%s3 + $0x180] sm:$0xff]
  %v326 = vld [vmem:[%s3 + $0x188] sm:$0xff]
  %v327 = vld [vmem:[%s3 + $0x190] sm:$0xff]
  %v328 = vld [vmem:[%s3 + $0x198] sm:$0xff]
  %v329 = vld [vmem:[%s3 + $0x1a0] sm:$0xff]
  %v330 = vld [vmem:[%s3 + $0x1a8] sm:$0xff]
  %v331 = vld [vmem:[%s3 + $0x1b0] sm:$0xff]
  %v332 = vld [vmem:[%s3 + $0x1b8] sm:$0xff]
  %v333 = vld [vmem:[%s3 + $0x1c0] sm:$0xff]
  %v334 = vld [vmem:[%s3 + $0x1c8] sm:$0xff]
  %v335 = vld [vmem:[%s3 + $0x1d0] sm:$0xff]
  %v336 = vld [vmem:[%s3 + $0x1d8] sm:$0xff]
  %v337 = vld [vmem:[%s3 + $0x1e0] sm:$0xff]
  %v338 = vld [vmem:[%s3 + $0x1e8] sm:$0xff]
  %v339 = vld [vmem:[%s3 + $0x1f0] sm:$0xff]
  %v340 = vld [vmem:[%s3 + $0x1f8] sm:$0xff]
  %341 = vmatprep.subr.mxu0 %v278
  %342 = vmatpush1.msra.mxu0 %v277
  %343 = vmatprep.subr.mxu0 %v282
  %344 = vmatpush1.msra.mxu0 %v281
  %345 = vmatprep.subr.mxu0 %v286
  %346 = vmatpush1.msra.mxu0 %v285
  %347 = vmatprep.subr.mxu0 %v290
  %348 = vmatpush1.msra.mxu0 %v289
  %349 = vmatprep.subr.mxu0 %v294
  %350 = vmatpush1.msra.mxu0 %v293
  %351 = vmatprep.subr.mxu0 %v298
  %352 = vmatpush1.msra.mxu0 %v297
  %353 = vmatprep.subr.mxu0 %v302
  %354 = vmatpush1.msra.mxu0 %v301
  %355 = vmatprep.subr.mxu0 %v306
  %356 = vmatpush1.msra.mxu0 %v305
  %357 = vmatprep.subr.mxu0 %v310
  %358 = vmatpush1.msra.mxu0 %v309
  %359 = vmatprep.subr.mxu0 %v314
  %360 = vmatpush1.msra.mxu0 %v313
  %361 = vmatprep.subr.mxu0 %v318
  %362 = vmatpush1.msra.mxu0 %v317
  %363 = vmatprep.subr.mxu0 %v322
  %364 = vmatpush1.msra.mxu0 %v321
  %365 = vmatprep.subr.mxu0 %v326
  %366 = vmatpush1.msra.mxu0 %v325
  %367 = vmatprep.subr.mxu0 %v330
  %368 = vmatpush1.msra.mxu0 %v329
  %369 = vmatprep.subr.mxu0 %v334
  %370 = vmatpush1.msra.mxu0 %v333
  %371 = vmatprep.subr.mxu0 %v338
  %372 = vmatpush1.msra.mxu0 %v337
  %373 = vmatprep.subr.mxu0 0.0
  %374 = vmatpush1.msra.mxu0 0.0
  %375 = vmatprep.subr.mxu0 0.0
  %376 = vmatpush1.msra.mxu0 0.0
  %377 = vmatprep.subr.mxu0 0.0
  %378 = vmatpush1.msra.mxu0 0.0
  %379 = vmatprep.subr.mxu0 0.0
  %380 = vmatpush1.msra.mxu0 0.0
  %381 = vmatprep.subr.mxu0 0.0
  %382 = vmatpush1.msra.mxu0 0.0
  %383 = vmatprep.subr.mxu0 0.0
  %384 = vmatpush1.msra.mxu0 0.0
  %385 = vmatprep.subr.mxu0 0.0
  %386 = vmatpush1.msra.mxu0 0.0
  %387 = vmatprep.subr.mxu0 0.0
  %388 = vmatpush1.msra.mxu0 0.0
  %389 = vmatprep.subr.mxu0 0.0
  %390 = vmatpush1.msra.mxu0 0.0
  %391 = vmatprep.subr.mxu0 0.0
  %392 = vmatpush1.msra.mxu0 0.0
  %393 = vmatprep.subr.mxu0 0.0
  %394 = vmatpush1.msra.mxu0 0.0
  %395 = vmatprep.subr.mxu0 0.0
  %396 = vmatpush1.msra.mxu0 0.0
  %397 = vmatprep.subr.mxu0 0.0
  %398 = vmatpush1.msra.mxu0 0.0
  %399 = vmatprep.subr.mxu0 0.0
  %400 = vmatpush1.msra.mxu0 0.0
  %401 = vmatprep.subr.mxu0 0.0
  %402 = vmatpush1.msra.mxu0 0.0
  %403 = vmatprep.subr.mxu0 0.0
  %404 = vmatpush1.msra.mxu0 0.0
  %405 = vmatprep.mubr.f32.mxu0 0.0
  %406 = vmatmul.mubr.f32.gmra.mrb[0].mxu0 %v276
  %v407 = vpop.f32.mrb[0].mxu0
  %v408 = vadd.f32 0.0, %v407
  %v409 = vpop.f32.mrb[0].mxu0
  %v410 = vadd.f32 0.0, %v409
  %411 = vdwg.mxu0
  %412 = vmatprep.subr.mxu0 %v280
  %413 = vmatpush1.msra.mxu0 %v279
  %414 = vmatprep.subr.mxu0 %v284
  %415 = vmatpush1.msra.mxu0 %v283
  %416 = vmatprep.subr.mxu0 %v288
  %417 = vmatpush1.msra.mxu0 %v287
  %418 = vmatprep.subr.mxu0 %v292
  %419 = vmatpush1.msra.mxu0 %v291
  %420 = vmatprep.subr.mxu0 %v296
  %421 = vmatpush1.msra.mxu0 %v295
  %422 = vmatprep.subr.mxu0 %v300
  %423 = vmatpush1.msra.mxu0 %v299
  %424 = vmatprep.subr.mxu0 %v304
  %425 = vmatpush1.msra.mxu0 %v303
  %426 = vmatprep.subr.mxu0 %v308
  %427 = vmatpush1.msra.mxu0 %v307
  %428 = vmatprep.subr.mxu0 %v312
  %429 = vmatpush1.msra.mxu0 %v311
  %430 = vmatprep.subr.mxu0 %v316
  %431 = vmatpush1.msra.mxu0 %v315
  %432 = vmatprep.subr.mxu0 %v320
  %433 = vmatpush1.msra.mxu0 %v319
  %434 = vmatprep.subr.mxu0 %v324
  %435 = vmatpush1.msra.mxu0 %v323
  %436 = vmatprep.subr.mxu0 %v328
  %437 = vmatpush1.msra.mxu0 %v327
  %438 = vmatprep.subr.mxu0 %v332
  %439 = vmatpush1.msra.mxu0 %v331
  %440 = vmatprep.subr.mxu0 %v336
  %441 = vmatpush1.msra.mxu0 %v335
  %442 = vmatprep.subr.mxu0 %v340
  %443 = vmatpush1.msra.mxu0 %v339
  %444 = vmatprep.subr.mxu0 0.0
  %445 = vmatpush1.msra.mxu0 0.0
  %446 = vmatprep.subr.mxu0 0.0
  %447 = vmatpush1.msra.mxu0 0.0
  %448 = vmatprep.subr.mxu0 0.0
  %449 = vmatpush1.msra.mxu0 0.0
  %450 = vmatprep.subr.mxu0 0.0
  %451 = vmatpush1.msra.mxu0 0.0
  %452 = vmatprep.subr.mxu0 0.0
  %453 = vmatpush1.msra.mxu0 0.0
  %454 = vmatprep.subr.mxu0 0.0
  %455 = vmatpush1.msra.mxu0 0.0
  %456 = vmatprep.subr.mxu0 0.0
  %457 = vmatpush1.msra.mxu0 0.0
  %458 = vmatprep.subr.mxu0 0.0
  %459 = vmatpush1.msra.mxu0 0.0
  %460 = vmatprep.subr.mxu0 0.0
  %461 = vmatpush1.msra.mxu0 0.0
  %462 = vmatprep.subr.mxu0 0.0
  %463 = vmatpush1.msra.mxu0 0.0
  %464 = vmatprep.subr.mxu0 0.0
  %465 = vmatpush1.msra.mxu0 0.0
  %466 = vmatprep.subr.mxu0 0.0
  %467 = vmatpush1.msra.mxu0 0.0
  %468 = vmatprep.subr.mxu0 0.0
  %469 = vmatpush1.msra.mxu0 0.0
  %470 = vmatprep.subr.mxu0 0.0
  %471 = vmatpush1.msra.mxu0 0.0
  %472 = vmatprep.subr.mxu0 0.0
  %473 = vmatpush1.msra.mxu0 0.0
  %474 = vmatprep.subr.mxu0 0.0
  %475 = vmatpush1.msra.mxu0 0.0
  %476 = vmatprep.mubr.f32.mxu0 0.0
  %477 = vmatmul.mubr.f32.gmra.mrb[0].mxu0 %v276
  %v478 = vpop.f32.mrb[0].mxu0
  %v479 = vadd.f32 0.0, %v478
  %v480 = vpop.f32.mrb[0].mxu0
  %v481 = vadd.f32 0.0, %v480
  %482 = vdwg.mxu0
  %v483 = vadd.f32 %v272, %v408
  %v484 = vadd.f32 %v273, %v410
  %v485 = vadd.f32 %v274, %v479
  %v486 = vadd.f32 %v275, %v481
  %v487 = vxor.u32 %v483, 2147483648
  %v488 = vmul.f32 %v487, 1.442695
  %v489 = vpow.pop %v488
  %v490 = vadd.f32 %v489, 1.0
  %v491 = vrcp.pop %v490
  %v492 = vmul.f32 1.0, %v491
  %v493 = vxor.u32 %v484, 2147483648
  %v494 = vmul.f32 %v493, 1.442695
  %v495 = vpow.pop %v494
  %v496 = vadd.f32 %v495, 1.0
  %v497 = vrcp.pop %v496
  %v498 = vmul.f32 1.0, %v497
  %v499 = vtanh.pop %v485
  %v500 = vxor.u32 %v486, 2147483648
  %v501 = vmul.f32 %v500, 1.442695
  %v502 = vpow.pop %v501
  %v503 = vadd.f32 %v502, 1.0
  %v504 = vrcp.pop %v503
  %v505 = vmul.f32 1.0, %v504
  %v506 = vld [vmem:[#allocation3] sm:$0xff]
  %v507 = vmul.f32 %v498, %v506
  %v508 = vmul.f32 %v492, %v499
  %v509 = vadd.f32 %v507, %v508
  %v510 = vtanh.pop %v509
  %v511 = vmul.f32 %v505, %v510
  %512 = vst [vmem:[#allocation3] sm:$0xff] %v509
  %513 = vst [vmem:[#allocation2] sm:$0xff] %v511
  %s514 = scalar_lea.vmem %s4, 8
  %515 = vst [vmem:[%s514] sm:$0xff] %v511
  %s516 = scalar_lea.vmem %s5, 8
  %517 = vst [vmem:[%s516] sm:$0xff] %v509
  %s518 = scalar_lea.vmem %s0, 64
  %v519 = vld [vmem:[%s518] sm:$0xff]
  %v520 = vld [vmem:[%s518 + $0x8] sm:$0xff]
  %v521 = vld [vmem:[%s518 + $0x10] sm:$0xff]
  %v522 = vld [vmem:[%s518 + $0x18] sm:$0xff]
  %v523 = vld [vmem:[#allocation2] sm:$0xff]
  %v524 = vld [vmem:[%s3] sm:$0xff]
  %v525 = vld [vmem:[%s3 + $0x8] sm:$0xff]
  %v526 = vld [vmem:[%s3 + $0x10] sm:$0xff]
  %v527 = vld [vmem:[%s3 + $0x18] sm:$0xff]
  %v528 = vld [vmem:[%s3 + $0x20] sm:$0xff]
  %v529 = vld [vmem:[%s3 + $0x28] sm:$0xff]
  %v530 = vld [vmem:[%s3 + $0x30] sm:$0xff]
  %v531 = vld [vmem:[%s3 + $0x38] sm:$0xff]
  %v532 = vld [vmem:[%s3 + $0x40] sm:$0xff]
  %v533 = vld [vmem:[%s3 + $0x48] sm:$0xff]
  %v534 = vld [vmem:[%s3 + $0x50] sm:$0xff]
  %v535 = vld [vmem:[%s3 + $0x58] sm:$0xff]
  %v536 = vld [vmem:[%s3 + $0x60] sm:$0xff]
  %v537 = vld [vmem:[%s3 + $0x68] sm:$0xff]
  %v538 = vld [vmem:[%s3 + $0x70] sm:$0xff]
  %v539 = vld [vmem:[%s3 + $0x78] sm:$0xff]
  %v540 = vld [vmem:[%s3 + $0x80] sm:$0xff]
  %v541 = vld [vmem:[%s3 + $0x88] sm:$0xff]
  %v542 = vld [vmem:[%s3 + $0x90] sm:$0xff]
  %v543 = vld [vmem:[%s3 + $0x98] sm:$0xff]
  %v544 = vld [vmem:[%s3 + $0xa0] sm:$0xff]
  %v545 = vld [vmem:[%s3 + $0xa8] sm:$0xff]
  %v546 = vld [vmem:[%s3 + $0xb0] sm:$0xff]
  %v547 = vld [vmem:[%s3 + $0xb8] sm:$0xff]
  %v548 = vld [vmem:[%s3 + $0xc0] sm:$0xff]
  %v549 = vld [vmem:[%s3 + $0xc8] sm:$0xff]
  %v550 = vld [vmem:[%s3 + $0xd0] sm:$0xff]
  %v551 = vld [vmem:[%s3 + $0xd8] sm:$0xff]
  %v552 = vld [vmem:[%s3 + $0xe0] sm:$0xff]
  %v553 = vld [vmem:[%s3 + $0xe8] sm:$0xff]
  %v554 = vld [vmem:[%s3 + $0xf0] sm:$0xff]
  %v555 = vld [vmem:[%s3 + $0xf8] sm:$0xff]
  %v556 = vld [vmem:[%s3 + $0x100] sm:$0xff]
  %v557 = vld [vmem:[%s3 + $0x108] sm:$0xff]
  %v558 = vld [vmem:[%s3 + $0x110] sm:$0xff]
  %v559 = vld [vmem:[%s3 + $0x118] sm:$0xff]
  %v560 = vld [vmem:[%s3 + $0x120] sm:$0xff]
  %v561 = vld [vmem:[%s3 + $0x128] sm:$0xff]
  %v562 = vld [vmem:[%s3 + $0x130] sm:$0xff]
  %v563 = vld [vmem:[%s3 + $0x138] sm:$0xff]
  %v564 = vld [vmem:[%s3 + $0x140] sm:$0xff]
  %v565 = vld [vmem:[%s3 + $0x148] sm:$0xff]
  %v566 = vld [vmem:[%s3 + $0x150] sm:$0xff]
  %v567 = vld [vmem:[%s3 + $0x158] sm:$0xff]
  %v568 = vld [vmem:[%s3 + $0x160] sm:$0xff]
  %v569 = vld [vmem:[%s3 + $0x168] sm:$0xff]
  %v570 = vld [vmem:[%s3 + $0x170] sm:$0xff]
  %v571 = vld [vmem:[%s3 + $0x178] sm:$0xff]
  %v572 = vld [vmem:[%s3 + $0x180] sm:$0xff]
  %v573 = vld [vmem:[%s3 + $0x188] sm:$0xff]
  %v574 = vld [vmem:[%s3 + $0x190] sm:$0xff]
  %v575 = vld [vmem:[%s3 + $0x198] sm:$0xff]
  %v576 = vld [vmem:[%s3 + $0x1a0] sm:$0xff]
  %v577 = vld [vmem:[%s3 + $0x1a8] sm:$0xff]
  %v578 = vld [vmem:[%s3 + $0x1b0] sm:$0xff]
  %v579 = vld [vmem:[%s3 + $0x1b8] sm:$0xff]
  %v580 = vld [vmem:[%s3 + $0x1c0] sm:$0xff]
  %v581 = vld [vmem:[%s3 + $0x1c8] sm:$0xff]
  %v582 = vld [vmem:[%s3 + $0x1d0] sm:$0xff]
  %v583 = vld [vmem:[%s3 + $0x1d8] sm:$0xff]
  %v584 = vld [vmem:[%s3 + $0x1e0] sm:$0xff]
  %v585 = vld [vmem:[%s3 + $0x1e8] sm:$0xff]
  %v586 = vld [vmem:[%s3 + $0x1f0] sm:$0xff]
  %v587 = vld [vmem:[%s3 + $0x1f8] sm:$0xff]
  %588 = vmatprep.subr.mxu0 %v525
  %589 = vmatpush1.msra.mxu0 %v524
  %590 = vmatprep.subr.mxu0 %v529
  %591 = vmatpush1.msra.mxu0 %v528
  %592 = vmatprep.subr.mxu0 %v533
  %593 = vmatpush1.msra.mxu0 %v532
  %594 = vmatprep.subr.mxu0 %v537
  %595 = vmatpush1.msra.mxu0 %v536
  %596 = vmatprep.subr.mxu0 %v541
  %597 = vmatpush1.msra.mxu0 %v540
  %598 = vmatprep.subr.mxu0 %v545
  %599 = vmatpush1.msra.mxu0 %v544
  %600 = vmatprep.subr.mxu0 %v549
  %601 = vmatpush1.msra.mxu0 %v548
  %602 = vmatprep.subr.mxu0 %v553
  %603 = vmatpush1.msra.mxu0 %v552
  %604 = vmatprep.subr.mxu0 %v557
  %605 = vmatpush1.msra.mxu0 %v556
  %606 = vmatprep.subr.mxu0 %v561
  %607 = vmatpush1.msra.mxu0 %v560
  %608 = vmatprep.subr.mxu0 %v565
  %609 = vmatpush1.msra.mxu0 %v564
  %610 = vmatprep.subr.mxu0 %v569
  %611 = vmatpush1.msra.mxu0 %v568
  %612 = vmatprep.subr.mxu0 %v573
  %613 = vmatpush1.msra.mxu0 %v572
  %614 = vmatprep.subr.mxu0 %v577
  %615 = vmatpush1.msra.mxu0 %v576
  %616 = vmatprep.subr.mxu0 %v581
  %617 = vmatpush1.msra.mxu0 %v580
  %618 = vmatprep.subr.mxu0 %v585
  %619 = vmatpush1.msra.mxu0 %v584
  %620 = vmatprep.subr.mxu0 0.0
  %621 = vmatpush1.msra.mxu0 0.0
  %622 = vmatprep.subr.mxu0 0.0
  %623 = vmatpush1.msra.mxu0 0.0
  %624 = vmatprep.subr.mxu0 0.0
  %625 = vmatpush1.msra.mxu0 0.0
  %626 = vmatprep.subr.mxu0 0.0
  %627 = vmatpush1.msra.mxu0 0.0
  %628 = vmatprep.subr.mxu0 0.0
  %629 = vmatpush1.msra.mxu0 0.0
  %630 = vmatprep.subr.mxu0 0.0
  %631 = vmatpush1.msra.mxu0 0.0
  %632 = vmatprep.subr.mxu0 0.0
  %633 = vmatpush1.msra.mxu0 0.0
  %634 = vmatprep.subr.mxu0 0.0
  %635 = vmatpush1.msra.mxu0 0.0
  %636 = vmatprep.subr.mxu0 0.0
  %637 = vmatpush1.msra.mxu0 0.0
  %638 = vmatprep.subr.mxu0 0.0
  %639 = vmatpush1.msra.mxu0 0.0
  %640 = vmatprep.subr.mxu0 0.0
  %641 = vmatpush1.msra.mxu0 0.0
  %642 = vmatprep.subr.mxu0 0.0
  %643 = vmatpush1.msra.mxu0 0.0
  %644 = vmatprep.subr.mxu0 0.0
  %645 = vmatpush1.msra.mxu0 0.0
  %646 = vmatprep.subr.mxu0 0.0
  %647 = vmatpush1.msra.mxu0 0.0
  %648 = vmatprep.subr.mxu0 0.0
  %649 = vmatpush1.msra.mxu0 0.0
  %650 = vmatprep.subr.mxu0 0.0
  %651 = vmatpush1.msra.mxu0 0.0
  %652 = vmatprep.mubr.f32.mxu0 0.0
  %653 = vmatmul.mubr.f32.gmra.mrb[0].mxu0 %v523
  %v654 = vpop.f32.mrb[0].mxu0
  %v655 = vadd.f32 0.0, %v654
  %v656 = vpop.f32.mrb[0].mxu0
  %v657 = vadd.f32 0.0, %v656
  %658 = vdwg.mxu0
  %659 = vmatprep.subr.mxu0 %v527
  %660 = vmatpush1.msra.mxu0 %v526
  %661 = vmatprep.subr.mxu0 %v531
  %662 = vmatpush1.msra.mxu0 %v530
  %663 = vmatprep.subr.mxu0 %v535
  %664 = vmatpush1.msra.mxu0 %v534
  %665 = vmatprep.subr.mxu0 %v539
  %666 = vmatpush1.msra.mxu0 %v538
  %667 = vmatprep.subr.mxu0 %v543
  %668 = vmatpush1.msra.mxu0 %v542
  %669 = vmatprep.subr.mxu0 %v547
  %670 = vmatpush1.msra.mxu0 %v546
  %671 = vmatprep.subr.mxu0 %v551
  %672 = vmatpush1.msra.mxu0 %v550
  %673 = vmatprep.subr.mxu0 %v555
  %674 = vmatpush1.msra.mxu0 %v554
  %675 = vmatprep.subr.mxu0 %v559
  %676 = vmatpush1.msra.mxu0 %v558
  %677 = vmatprep.subr.mxu0 %v563
  %678 = vmatpush1.msra.mxu0 %v562
  %679 = vmatprep.subr.mxu0 %v567
  %680 = vmatpush1.msra.mxu0 %v566
  %681 = vmatprep.subr.mxu0 %v571
  %682 = vmatpush1.msra.mxu0 %v570
  %683 = vmatprep.subr.mxu0 %v575
  %684 = vmatpush1.msra.mxu0 %v574
  %685 = vmatprep.subr.mxu0 %v579
  %686 = vmatpush1.msra.mxu0 %v578
  %687 = vmatprep.subr.mxu0 %v583
  %688 = vmatpush1.msra.mxu0 %v582
  %689 = vmatprep.subr.mxu0 %v587
  %690 = vmatpush1.msra.mxu0 %v586
  %691 = vmatprep.subr.mxu0 0.0
  %692 = vmatpush1.msra.mxu0 0.0
  %693 = vmatprep.subr.mxu0 0.0
  %694 = vmatpush1.msra.mxu0 0.0
  %695 = vmatprep.subr.mxu0 0.0
  %696 = vmatpush1.msra.mxu0 0.0
  %697 = vmatprep.subr.mxu0 0.0
  %698 = vmatpush1.msra.mxu0 0.0
  %699 = vmatprep.subr.mxu0 0.0
  %700 = vmatpush1.msra.mxu0 0.0
  %701 = vmatprep.subr.mxu0 0.0
  %702 = vmatpush1.msra.mxu0 0.0
  %703 = vmatprep.subr.mxu0 0.0
  %704 = vmatpush1.msra.mxu0 0.0
  %705 = vmatprep.subr.mxu0 0.0
  %706 = vmatpush1.msra.mxu0 0.0
  %707 = vmatprep.subr.mxu0 0.0
  %708 = vmatpush1.msra.mxu0 0.0
  %709 = vmatprep.subr.mxu0 0.0
  %710 = vmatpush1.msra.mxu0 0.0
  %711 = vmatprep.subr.mxu0 0.0
  %712 = vmatpush1.msra.mxu0 0.0
  %713 = vmatprep.subr.mxu0 0.0
  %714 = vmatpush1.msra.mxu0 0.0
  %715 = vmatprep.subr.mxu0 0.0
  %716 = vmatpush1.msra.mxu0 0.0
  %717 = vmatprep.subr.mxu0 0.0
  %718 = vmatpush1.msra.mxu0 0.0
  %719 = vmatprep.subr.mxu0 0.0
  %720 = vmatpush1.msra.mxu0 0.0
  %721 = vmatprep.subr.mxu0 0.0
  %722 = vmatpush1.msra.mxu0 0.0
  %723 = vmatprep.mubr.f32.mxu0 0.0
  %724 = vmatmul.mubr.f32.gmra.mrb[0].mxu0 %v523
  %v725 = vpop.f32.mrb[0].mxu0
  %v726 = vadd.f32 0.0, %v725
  %v727 = vpop.f32.mrb[0].mxu0
  %v728 = vadd.f32 0.0, %v727
  %729 = vdwg.mxu0
  %v730 = vadd.f32 %v519, %v655
  %v731 = vadd.f32 %v520, %v657
  %v732 = vadd.f32 %v521, %v726
  %v733 = vadd.f32 %v522, %v728
  %v734 = vxor.u32 %v730, 2147483648
  %v735 = vmul.f32 %v734, 1.442695
  %v736 = vpow.pop %v735
  %v737 = vadd.f32 %v736, 1.0
  %v738 = vrcp.pop %v737
  %v739 = vmul.f32 1.0, %v738
  %v740 = vxor.u32 %v731, 2147483648
  %v741 = vmul.f32 %v740, 1.442695
  %v742 = vpow.pop %v741
  %v743 = vadd.f32 %v742, 1.0
  %v744 = vrcp.pop %v743
  %v745 = vmul.f32 1.0, %v744
  %v746 = vtanh.pop %v732
  %v747 = vxor.u32 %v733, 2147483648
  %v748 = vmul.f32 %v747, 1.442695
  %v749 = vpow.pop %v748
  %v750 = vadd.f32 %v749, 1.0
  %v751 = vrcp.pop %v750
  %v752 = vmul.f32 1.0, %v751
  %v753 = vld [vmem:[#allocation3] sm:$0xff]
  %v754 = vmul.f32 %v745, %v753
  %v755 = vmul.f32 %v739, %v746
  %v756 = vadd.f32 %v754, %v755
  %v757 = vtanh.pop %v756
  %v758 = vmul.f32 %v752, %v757
  %759 = vst [vmem:[#allocation3] sm:$0xff] %v756
  %760 = vst [vmem:[#allocation2] sm:$0xff] %v758
  %s761 = scalar_lea.vmem %s4, 16
  %762 = vst [vmem:[%s761] sm:$0xff] %v758
  %s763 = scalar_lea.vmem %s5, 16
  %764 = vst [vmem:[%s763] sm:$0xff] %v756
  %s765 = scalar_lea.vmem %s0, 96
  %v766 = vld [vmem:[%s765] sm:$0xff]
  %v767 = vld [vmem:[%s765 + $0x8] sm:$0xff]
  %v768 = vld [vmem:[%s765 + $0x10] sm:$0xff]
  %v769 = vld [vmem:[%s765 + $0x18] sm:$0xff]
  %v770 = vld [vmem:[#allocation2] sm:$0xff]
  %v771 = vld [vmem:[%s3] sm:$0xff]
  %v772 = vld [vmem:[%s3 + $0x8] sm:$0xff]
  %v773 = vld [vmem:[%s3 + $0x10] sm:$0xff]
  %v774 = vld [vmem:[%s3 + $0x18] sm:$0xff]
  %v775 = vld [vmem:[%s3 + $0x20] sm:$0xff]
  %v776 = vld [vmem:[%s3 + $0x28] sm:$0xff]
  %v777 = vld [vmem:[%s3 + $0x30] sm:$0xff]
  %v778 = vld [vmem:[%s3 + $0x38] sm:$0xff]
  %v779 = vld [vmem:[%s3 + $0x40] sm:$0xff]
  %v780 = vld [vmem:[%s3 + $0x48] sm:$0xff]
  %v781 = vld [vmem:[%s3 + $0x50] sm:$0xff]
  %v782 = vld [vmem:[%s3 + $0x58] sm:$0xff]
  %v783 = vld [vmem:[%s3 + $0x60] sm:$0xff]
  %v784 = vld [vmem:[%s3 + $0x68] sm:$0xff]
  %v785 = vld [vmem:[%s3 + $0x70] sm:$0xff]
  %v786 = vld [vmem:[%s3 + $0x78] sm:$0xff]
  %v787 = vld [vmem:[%s3 + $0x80] sm:$0xff]
  %v788 = vld [vmem:[%s3 + $0x88] sm:$0xff]
  %v789 = vld [vmem:[%s3 + $0x90] sm:$0xff]
  %v790 = vld [vmem:[%s3 + $0x98] sm:$0xff]
  %v791 = vld [vmem:[%s3 + $0xa0] sm:$0xff]
  %v792 = vld [vmem:[%s3 + $0xa8] sm:$0xff]
  %v793 = vld [vmem:[%s3 + $0xb0] sm:$0xff]
  %v794 = vld [vmem:[%s3 + $0xb8] sm:$0xff]
  %v795 = vld [vmem:[%s3 + $0xc0] sm:$0xff]
  %v796 = vld [vmem:[%s3 + $0xc8] sm:$0xff]
  %v797 = vld [vmem:[%s3 + $0xd0] sm:$0xff]
  %v798 = vld [vmem:[%s3 + $0xd8] sm:$0xff]
  %v799 = vld [vmem:[%s3 + $0xe0] sm:$0xff]
  %v800 = vld [vmem:[%s3 + $0xe8] sm:$0xff]
  %v801 = vld [vmem:[%s3 + $0xf0] sm:$0xff]
  %v802 = vld [vmem:[%s3 + $0xf8] sm:$0xff]
  %v803 = vld [vmem:[%s3 + $0x100] sm:$0xff]
  %v804 = vld [vmem:[%s3 + $0x108] sm:$0xff]
  %v805 = vld [vmem:[%s3 + $0x110] sm:$0xff]
  %v806 = vld [vmem:[%s3 + $0x118] sm:$0xff]
  %v807 = vld [vmem:[%s3 + $0x120] sm:$0xff]
  %v808 = vld [vmem:[%s3 + $0x128] sm:$0xff]
  %v809 = vld [vmem:[%s3 + $0x130] sm:$0xff]
  %v810 = vld [vmem:[%s3 + $0x138] sm:$0xff]
  %v811 = vld [vmem:[%s3 + $0x140] sm:$0xff]
  %v812 = vld [vmem:[%s3 + $0x148] sm:$0xff]
  %v813 = vld [vmem:[%s3 + $0x150] sm:$0xff]
  %v814 = vld [vmem:[%s3 + $0x158] sm:$0xff]
  %v815 = vld [vmem:[%s3 + $0x160] sm:$0xff]
  %v816 = vld [vmem:[%s3 + $0x168] sm:$0xff]
  %v817 = vld [vmem:[%s3 + $0x170] sm:$0xff]
  %v818 = vld [vmem:[%s3 + $0x178] sm:$0xff]
  %v819 = vld [vmem:[%s3 + $0x180] sm:$0xff]
  %v820 = vld [vmem:[%s3 + $0x188] sm:$0xff]
  %v821 = vld [vmem:[%s3 + $0x190] sm:$0xff]
  %v822 = vld [vmem:[%s3 + $0x198] sm:$0xff]
  %v823 = vld [vmem:[%s3 + $0x1a0] sm:$0xff]
  %v824 = vld [vmem:[%s3 + $0x1a8] sm:$0xff]
  %v825 = vld [vmem:[%s3 + $0x1b0] sm:$0xff]
  %v826 = vld [vmem:[%s3 + $0x1b8] sm:$0xff]
  %v827 = vld [vmem:[%s3 + $0x1c0] sm:$0xff]
  %v828 = vld [vmem:[%s3 + $0x1c8] sm:$0xff]
  %v829 = vld [vmem:[%s3 + $0x1d0] sm:$0xff]
  %v830 = vld [vmem:[%s3 + $0x1d8] sm:$0xff]
  %v831 = vld [vmem:[%s3 + $0x1e0] sm:$0xff]
  %v832 = vld [vmem:[%s3 + $0x1e8] sm:$0xff]
  %v833 = vld [vmem:[%s3 + $0x1f0] sm:$0xff]
  %v834 = vld [vmem:[%s3 + $0x1f8] sm:$0xff]
  %835 = vmatprep.subr.mxu0 %v772
  %836 = vmatpush1.msra.mxu0 %v771
  %837 = vmatprep.subr.mxu0 %v776
  %838 = vmatpush1.msra.mxu0 %v775
  %839 = vmatprep.subr.mxu0 %v780
  %840 = vmatpush1.msra.mxu0 %v779
  %841 = vmatprep.subr.mxu0 %v784
  %842 = vmatpush1.msra.mxu0 %v783
  %843 = vmatprep.subr.mxu0 %v788
  %844 = vmatpush1.msra.mxu0 %v787
  %845 = vmatprep.subr.mxu0 %v792
  %846 = vmatpush1.msra.mxu0 %v791
  %847 = vmatprep.subr.mxu0 %v796
  %848 = vmatpush1.msra.mxu0 %v795
  %849 = vmatprep.subr.mxu0 %v800
  %850 = vmatpush1.msra.mxu0 %v799
  %851 = vmatprep.subr.mxu0 %v804
  %852 = vmatpush1.msra.mxu0 %v803
  %853 = vmatprep.subr.mxu0 %v808
  %854 = vmatpush1.msra.mxu0 %v807
  %855 = vmatprep.subr.mxu0 %v812
  %856 = vmatpush1.msra.mxu0 %v811
  %857 = vmatprep.subr.mxu0 %v816
  %858 = vmatpush1.msra.mxu0 %v815
  %859 = vmatprep.subr.mxu0 %v820
  %860 = vmatpush1.msra.mxu0 %v819
  %861 = vmatprep.subr.mxu0 %v824
  %862 = vmatpush1.msra.mxu0 %v823
  %863 = vmatprep.subr.mxu0 %v828
  %864 = vmatpush1.msra.mxu0 %v827
  %865 = vmatprep.subr.mxu0 %v832
  %866 = vmatpush1.msra.mxu0 %v831
  %867 = vmatprep.subr.mxu0 0.0
  %868 = vmatpush1.msra.mxu0 0.0
  %869 = vmatprep.subr.mxu0 0.0
  %870 = vmatpush1.msra.mxu0 0.0
  %871 = vmatprep.subr.mxu0 0.0
  %872 = vmatpush1.msra.mxu0 0.0
  %873 = vmatprep.subr.mxu0 0.0
  %874 = vmatpush1.msra.mxu0 0.0
  %875 = vmatprep.subr.mxu0 0.0
  %876 = vmatpush1.msra.mxu0 0.0
  %877 = vmatprep.subr.mxu0 0.0
  %878 = vmatpush1.msra.mxu0 0.0
  %879 = vmatprep.subr.mxu0 0.0
  %880 = vmatpush1.msra.mxu0 0.0
  %881 = vmatprep.subr.mxu0 0.0
  %882 = vmatpush1.msra.mxu0 0.0
  %883 = vmatprep.subr.mxu0 0.0
  %884 = vmatpush1.msra.mxu0 0.0
  %885 = vmatprep.subr.mxu0 0.0
  %886 = vmatpush1.msra.mxu0 0.0
  %887 = vmatprep.subr.mxu0 0.0
  %888 = vmatpush1.msra.mxu0 0.0
  %889 = vmatprep.subr.mxu0 0.0
  %890 = vmatpush1.msra.mxu0 0.0
  %891 = vmatprep.subr.mxu0 0.0
  %892 = vmatpush1.msra.mxu0 0.0
  %893 = vmatprep.subr.mxu0 0.0
  %894 = vmatpush1.msra.mxu0 0.0
  %895 = vmatprep.subr.mxu0 0.0
  %896 = vmatpush1.msra.mxu0 0.0
  %897 = vmatprep.subr.mxu0 0.0
  %898 = vmatpush1.msra.mxu0 0.0
  %899 = vmatprep.mubr.f32.mxu0 0.0
  %900 = vmatmul.mubr.f32.gmra.mrb[0].mxu0 %v770
  %v901 = vpop.f32.mrb[0].mxu0
  %v902 = vadd.f32 0.0, %v901
  %v903 = vpop.f32.mrb[0].mxu0
  %v904 = vadd.f32 0.0, %v903
  %905 = vdwg.mxu0
  %906 = vmatprep.subr.mxu0 %v774
  %907 = vmatpush1.msra.mxu0 %v773
  %908 = vmatprep.subr.mxu0 %v778
  %909 = vmatpush1.msra.mxu0 %v777
  %910 = vmatprep.subr.mxu0 %v782
  %911 = vmatpush1.msra.mxu0 %v781
  %912 = vmatprep.subr.mxu0 %v786
  %913 = vmatpush1.msra.mxu0 %v785
  %914 = vmatprep.subr.mxu0 %v790
  %915 = vmatpush1.msra.mxu0 %v789
  %916 = vmatprep.subr.mxu0 %v794
  %917 = vmatpush1.msra.mxu0 %v793
  %918 = vmatprep.subr.mxu0 %v798
  %919 = vmatpush1.msra.mxu0 %v797
  %920 = vmatprep.subr.mxu0 %v802
  %921 = vmatpush1.msra.mxu0 %v801
  %922 = vmatprep.subr.mxu0 %v806
  %923 = vmatpush1.msra.mxu0 %v805
  %924 = vmatprep.subr.mxu0 %v810
  %925 = vmatpush1.msra.mxu0 %v809
  %926 = vmatprep.subr.mxu0 %v814
  %927 = vmatpush1.msra.mxu0 %v813
  %928 = vmatprep.subr.mxu0 %v818
  %929 = vmatpush1.msra.mxu0 %v817
  %930 = vmatprep.subr.mxu0 %v822
  %931 = vmatpush1.msra.mxu0 %v821
  %932 = vmatprep.subr.mxu0 %v826
  %933 = vmatpush1.msra.mxu0 %v825
  %934 = vmatprep.subr.mxu0 %v830
  %935 = vmatpush1.msra.mxu0 %v829
  %936 = vmatprep.subr.mxu0 %v834
  %937 = vmatpush1.msra.mxu0 %v833
  %938 = vmatprep.subr.mxu0 0.0
  %939 = vmatpush1.msra.mxu0 0.0
  %940 = vmatprep.subr.mxu0 0.0
  %941 = vmatpush1.msra.mxu0 0.0
  %942 = vmatprep.subr.mxu0 0.0
  %943 = vmatpush1.msra.mxu0 0.0
  %944 = vmatprep.subr.mxu0 0.0
  %945 = vmatpush1.msra.mxu0 0.0
  %946 = vmatprep.subr.mxu0 0.0
  %947 = vmatpush1.msra.mxu0 0.0
  %948 = vmatprep.subr.mxu0 0.0
  %949 = vmatpush1.msra.mxu0 0.0
  %950 = vmatprep.subr.mxu0 0.0
  %951 = vmatpush1.msra.mxu0 0.0
  %952 = vmatprep.subr.mxu0 0.0
  %953 = vmatpush1.msra.mxu0 0.0
  %954 = vmatprep.subr.mxu0 0.0
  %955 = vmatpush1.msra.mxu0 0.0
  %956 = vmatprep.subr.mxu0 0.0
  %957 = vmatpush1.msra.mxu0 0.0
  %958 = vmatprep.subr.mxu0 0.0
  %959 = vmatpush1.msra.mxu0 0.0
  %960 = vmatprep.subr.mxu0 0.0
  %961 = vmatpush1.msra.mxu0 0.0
  %962 = vmatprep.subr.mxu0 0.0
  %963 = vmatpush1.msra.mxu0 0.0
  %964 = vmatprep.subr.mxu0 0.0
  %965 = vmatpush1.msra.mxu0 0.0
  %966 = vmatprep.subr.mxu0 0.0
  %967 = vmatpush1.msra.mxu0 0.0
  %968 = vmatprep.subr.mxu0 0.0
  %969 = vmatpush1.msra.mxu0 0.0
  %970 = vmatprep.mubr.f32.mxu0 0.0
  %971 = vmatmul.mubr.f32.gmra.mrb[0].mxu0 %v770
  %v972 = vpop.f32.mrb[0].mxu0
  %v973 = vadd.f32 0.0, %v972
  %v974 = vpop.f32.mrb[0].mxu0
  %v975 = vadd.f32 0.0, %v974
  %976 = vdwg.mxu0
  %v977 = vadd.f32 %v766, %v902
  %v978 = vadd.f32 %v767, %v904
  %v979 = vadd.f32 %v768, %v973
  %v980 = vadd.f32 %v769, %v975
  %v981 = vxor.u32 %v977, 2147483648
  %v982 = vmul.f32 %v981, 1.442695
  %v983 = vpow.pop %v982
  %v984 = vadd.f32 %v983, 1.0
  %v985 = vrcp.pop %v984
  %v986 = vmul.f32 1.0, %v985
  %v987 = vxor.u32 %v978, 2147483648
  %v988 = vmul.f32 %v987, 1.442695
  %v989 = vpow.pop %v988
  %v990 = vadd.f32 %v989, 1.0
  %v991 = vrcp.pop %v990
  %v992 = vmul.f32 1.0, %v991
  %v993 = vtanh.pop %v979
  %v994 = vxor.u32 %v980, 2147483648
  %v995 = vmul.f32 %v994, 1.442695
  %v996 = vpow.pop %v995
  %v997 = vadd.f32 %v996, 1.0
  %v998 = vrcp.pop %v997
  %v999 = vmul.f32 1.0, %v998
  %v1000 = vld [vmem:[#allocation3] sm:$0xff]
  %v1001 = vmul.f32 %v992, %v1000
  %v1002 = vmul.f32 %v986, %v993
  %v1003 = vadd.f32 %v1001, %v1002
  %v1004 = vtanh.pop %v1003
  %v1005 = vmul.f32 %v999, %v1004
  %1006 = vst [vmem:[#allocation3] sm:$0xff] %v1003
  %1007 = vst [vmem:[#allocation2] sm:$0xff] %v1005
  %s1008 = scalar_lea.vmem %s4, 24
  %1009 = vst [vmem:[%s1008] sm:$0xff] %v1005
  %s1010 = scalar_lea.vmem %s5, 24
  %1011 = vst [vmem:[%s1010] sm:$0xff] %v1003
  %s1012 = scalar_lea.vmem %s0, 128
  %v1013 = vld [vmem:[%s1012] sm:$0xff]
  %v1014 = vld [vmem:[%s1012 + $0x8] sm:$0xff]
  %v1015 = vld [vmem:[%s1012 + $0x10] sm:$0xff]
  %v1016 = vld [vmem:[%s1012 + $0x18] sm:$0xff]
  %v1017 = vld [vmem:[#allocation2] sm:$0xff]
  %v1018 = vld [vmem:[%s3] sm:$0xff]
  %v1019 = vld [vmem:[%s3 + $0x8] sm:$0xff]
  %v1020 = vld [vmem:[%s3 + $0x10] sm:$0xff]
  %v1021 = vld [vmem:[%s3 + $0x18] sm:$0xff]
  %v1022 = vld [vmem:[%s3 + $0x20] sm:$0xff]
  %v1023 = vld [vmem:[%s3 + $0x28] sm:$0xff]
  %v1024 = vld [vmem:[%s3 + $0x30] sm:$0xff]
  %v1025 = vld [vmem:[%s3 + $0x38] sm:$0xff]
  %v1026 = vld [vmem:[%s3 + $0x40] sm:$0xff]
  %v1027 = vld [vmem:[%s3 + $0x48] sm:$0xff]
  %v1028 = vld [vmem:[%s3 + $0x50] sm:$0xff]
  %v1029 = vld [vmem:[%s3 + $0x58] sm:$0xff]
  %v1030 = vld [vmem:[%s3 + $0x60] sm:$0xff]
  %v1031 = vld [vmem:[%s3 + $0x68] sm:$0xff]
  %v1032 = vld [vmem:[%s3 + $0x70] sm:$0xff]
  %v1033 = vld [vmem:[%s3 + $0x78] sm:$0xff]
  %v1034 = vld [vmem:[%s3 + $0x80] sm:$0xff]
  %v1035 = vld [vmem:[%s3 + $0x88] sm:$0xff]
  %v1036 = vld [vmem:[%s3 + $0x90] sm:$0xff]
  %v1037 = vld [vmem:[%s3 + $0x98] sm:$0xff]
  %v1038 = vld [vmem:[%s3 + $0xa0] sm:$0xff]
  %v1039 = vld [vmem:[%s3 + $0xa8] sm:$0xff]
  %v1040 = vld [vmem:[%s3 + $0xb0] sm:$0xff]
  %v1041 = vld [vmem:[%s3 + $0xb8] sm:$0xff]
  %v1042 = vld [vmem:[%s3 + $0xc0] sm:$0xff]
  %v1043 = vld [vmem:[%s3 + $0xc8] sm:$0xff]
  %v1044 = vld [vmem:[%s3 + $0xd0] sm:$0xff]
  %v1045 = vld [vmem:[%s3 + $0xd8] sm:$0xff]
  %v1046 = vld [vmem:[%s3 + $0xe0] sm:$0xff]
  %v1047 = vld [vmem:[%s3 + $0xe8] sm:$0xff]
  %v1048 = vld [vmem:[%s3 + $0xf0] sm:$0xff]
  %v1049 = vld [vmem:[%s3 + $0xf8] sm:$0xff]
  %v1050 = vld [vmem:[%s3 + $0x100] sm:$0xff]
  %v1051 = vld [vmem:[%s3 + $0x108] sm:$0xff]
  %v1052 = vld [vmem:[%s3 + $0x110] sm:$0xff]
  %v1053 = vld [vmem:[%s3 + $0x118] sm:$0xff]
  %v1054 = vld [vmem:[%s3 + $0x120] sm:$0xff]
  %v1055 = vld [vmem:[%s3 + $0x128] sm:$0xff]
  %v1056 = vld [vmem:[%s3 + $0x130] sm:$0xff]
  %v1057 = vld [vmem:[%s3 + $0x138] sm:$0xff]
  %v1058 = vld [vmem:[%s3 + $0x140] sm:$0xff]
  %v1059 = vld [vmem:[%s3 + $0x148] sm:$0xff]
  %v1060 = vld [vmem:[%s3 + $0x150] sm:$0xff]
  %v1061 = vld [vmem:[%s3 + $0x158] sm:$0xff]
  %v1062 = vld [vmem:[%s3 + $0x160] sm:$0xff]
  %v1063 = vld [vmem:[%s3 + $0x168] sm:$0xff]
  %v1064 = vld [vmem:[%s3 + $0x170] sm:$0xff]
  %v1065 = vld [vmem:[%s3 + $0x178] sm:$0xff]
  %v1066 = vld [vmem:[%s3 + $0x180] sm:$0xff]
  %v1067 = vld [vmem:[%s3 + $0x188] sm:$0xff]
  %v1068 = vld [vmem:[%s3 + $0x190] sm:$0xff]
  %v1069 = vld [vmem:[%s3 + $0x198] sm:$0xff]
  %v1070 = vld [vmem:[%s3 + $0x1a0] sm:$0xff]
  %v1071 = vld [vmem:[%s3 + $0x1a8] sm:$0xff]
  %v1072 = vld [vmem:[%s3 + $0x1b0] sm:$0xff]
  %v1073 = vld [vmem:[%s3 + $0x1b8] sm:$0xff]
  %v1074 = vld [vmem:[%s3 + $0x1c0] sm:$0xff]
  %v1075 = vld [vmem:[%s3 + $0x1c8] sm:$0xff]
  %v1076 = vld [vmem:[%s3 + $0x1d0] sm:$0xff]
  %v1077 = vld [vmem:[%s3 + $0x1d8] sm:$0xff]
  %v1078 = vld [vmem:[%s3 + $0x1e0] sm:$0xff]
  %v1079 = vld [vmem:[%s3 + $0x1e8] sm:$0xff]
  %v1080 = vld [vmem:[%s3 + $0x1f0] sm:$0xff]
  %v1081 = vld [vmem:[%s3 + $0x1f8] sm:$0xff]
  %1082 = vmatprep.subr.mxu0 %v1019
  %1083 = vmatpush1.msra.mxu0 %v1018
  %1084 = vmatprep.subr.mxu0 %v1023
  %1085 = vmatpush1.msra.mxu0 %v1022
  %1086 = vmatprep.subr.mxu0 %v1027
  %1087 = vmatpush1.msra.mxu0 %v1026
  %1088 = vmatprep.subr.mxu0 %v1031
  %1089 = vmatpush1.msra.mxu0 %v1030
  %1090 = vmatprep.subr.mxu0 %v1035
  %1091 = vmatpush1.msra.mxu0 %v1034
  %1092 = vmatprep.subr.mxu0 %v1039
  %1093 = vmatpush1.msra.mxu0 %v1038
  %1094 = vmatprep.subr.mxu0 %v1043
  %1095 = vmatpush1.msra.mxu0 %v1042
  %1096 = vmatprep.subr.mxu0 %v1047
  %1097 = vmatpush1.msra.mxu0 %v1046
  %1098 = vmatprep.subr.mxu0 %v1051
  %1099 = vmatpush1.msra.mxu0 %v1050
  %1100 = vmatprep.subr.mxu0 %v1055
  %1101 = vmatpush1.msra.mxu0 %v1054
  %1102 = vmatprep.subr.mxu0 %v1059
  %1103 = vmatpush1.msra.mxu0 %v1058
  %1104 = vmatprep.subr.mxu0 %v1063
  %1105 = vmatpush1.msra.mxu0 %v1062
  %1106 = vmatprep.subr.mxu0 %v1067
  %1107 = vmatpush1.msra.mxu0 %v1066
  %1108 = vmatprep.subr.mxu0 %v1071
  %1109 = vmatpush1.msra.mxu0 %v1070
  %1110 = vmatprep.subr.mxu0 %v1075
  %1111 = vmatpush1.msra.mxu0 %v1074
  %1112 = vmatprep.subr.mxu0 %v1079
  %1113 = vmatpush1.msra.mxu0 %v1078
  %1114 = vmatprep.subr.mxu0 0.0
  %1115 = vmatpush1.msra.mxu0 0.0
  %1116 = vmatprep.subr.mxu0 0.0
  %1117 = vmatpush1.msra.mxu0 0.0
  %1118 = vmatprep.subr.mxu0 0.0
  %1119 = vmatpush1.msra.mxu0 0.0
  %1120 = vmatprep.subr.mxu0 0.0
  %1121 = vmatpush1.msra.mxu0 0.0
  %1122 = vmatprep.subr.mxu0 0.0
  %1123 = vmatpush1.msra.mxu0 0.0
  %1124 = vmatprep.subr.mxu0 0.0
  %1125 = vmatpush1.msra.mxu0 0.0
  %1126 = vmatprep.subr.mxu0 0.0
  %1127 = vmatpush1.msra.mxu0 0.0
  %1128 = vmatprep.subr.mxu0 0.0
  %1129 = vmatpush1.msra.mxu0 0.0
  %1130 = vmatprep.subr.mxu0 0.0
  %1131 = vmatpush1.msra.mxu0 0.0
  %1132 = vmatprep.subr.mxu0 0.0
  %1133 = vmatpush1.msra.mxu0 0.0
  %1134 = vmatprep.subr.mxu0 0.0
  %1135 = vmatpush1.msra.mxu0 0.0
  %1136 = vmatprep.subr.mxu0 0.0
  %1137 = vmatpush1.msra.mxu0 0.0
  %1138 = vmatprep.subr.mxu0 0.0
  %1139 = vmatpush1.msra.mxu0 0.0
  %1140 = vmatprep.subr.mxu0 0.0
  %1141 = vmatpush1.msra.mxu0 0.0
  %1142 = vmatprep.subr.mxu0 0.0
  %1143 = vmatpush1.msra.mxu0 0.0
  %1144 = vmatprep.subr.mxu0 0.0
  %1145 = vmatpush1.msra.mxu0 0.0
  %1146 = vmatprep.mubr.f32.mxu0 0.0
  %1147 = vmatmul.mubr.f32.gmra.mrb[0].mxu0 %v1017
  %v1148 = vpop.f32.mrb[0].mxu0
  %v1149 = vadd.f32 0.0, %v1148
  %v1150 = vpop.f32.mrb[0].mxu0
  %v1151 = vadd.f32 0.0, %v1150
  %1152 = vdwg.mxu0
  %1153 = vmatprep.subr.mxu0 %v1021
  %1154 = vmatpush1.msra.mxu0 %v1020
  %1155 = vmatprep.subr.mxu0 %v1025
  %1156 = vmatpush1.msra.mxu0 %v1024
  %1157 = vmatprep.subr.mxu0 %v1029
  %1158 = vmatpush1.msra.mxu0 %v1028
  %1159 = vmatprep.subr.mxu0 %v1033
  %1160 = vmatpush1.msra.mxu0 %v1032
  %1161 = vmatprep.subr.mxu0 %v1037
  %1162 = vmatpush1.msra.mxu0 %v1036
  %1163 = vmatprep.subr.mxu0 %v1041
  %1164 = vmatpush1.msra.mxu0 %v1040
  %1165 = vmatprep.subr.mxu0 %v1045
  %1166 = vmatpush1.msra.mxu0 %v1044
  %1167 = vmatprep.subr.mxu0 %v1049
  %1168 = vmatpush1.msra.mxu0 %v1048
  %1169 = vmatprep.subr.mxu0 %v1053
  %1170 = vmatpush1.msra.mxu0 %v1052
  %1171 = vmatprep.subr.mxu0 %v1057
  %1172 = vmatpush1.msra.mxu0 %v1056
  %1173 = vmatprep.subr.mxu0 %v1061
  %1174 = vmatpush1.msra.mxu0 %v1060
  %1175 = vmatprep.subr.mxu0 %v1065
  %1176 = vmatpush1.msra.mxu0 %v1064
  %1177 = vmatprep.subr.mxu0 %v1069
  %1178 = vmatpush1.msra.mxu0 %v1068
  %1179 = vmatprep.subr.mxu0 %v1073
  %1180 = vmatpush1.msra.mxu0 %v1072
  %1181 = vmatprep.subr.mxu0 %v1077
  %1182 = vmatpush1.msra.mxu0 %v1076
  %1183 = vmatprep.subr.mxu0 %v1081
  %1184 = vmatpush1.msra.mxu0 %v1080
  %1185 = vmatprep.subr.mxu0 0.0
  %1186 = vmatpush1.msra.mxu0 0.0
  %1187 = vmatprep.subr.mxu0 0.0
  %1188 = vmatpush1.msra.mxu0 0.0
  %1189 = vmatprep.subr.mxu0 0.0
  %1190 = vmatpush1.msra.mxu0 0.0
  %1191 = vmatprep.subr.mxu0 0.0
  %1192 = vmatpush1.msra.mxu0 0.0
  %1193 = vmatprep.subr.mxu0 0.0
  %1194 = vmatpush1.msra.mxu0 0.0
  %1195 = vmatprep.subr.mxu0 0.0
  %1196 = vmatpush1.msra.mxu0 0.0
  %1197 = vmatprep.subr.mxu0 0.0
  %1198 = vmatpush1.msra.mxu0 0.0
  %1199 = vmatprep.subr.mxu0 0.0
  %1200 = vmatpush1.msra.mxu0 0.0
  %1201 = vmatprep.subr.mxu0 0.0
  %1202 = vmatpush1.msra.mxu0 0.0
  %1203 = vmatprep.subr.mxu0 0.0
  %1204 = vmatpush1.msra.mxu0 0.0
  %1205 = vmatprep.subr.mxu0 0.0
  %1206 = vmatpush1.msra.mxu0 0.0
  %1207 = vmatprep.subr.mxu0 0.0
  %1208 = vmatpush1.msra.mxu0 0.0
  %1209 = vmatprep.subr.mxu0 0.0
  %1210 = vmatpush1.msra.mxu0 0.0
  %1211 = vmatprep.subr.mxu0 0.0
  %1212 = vmatpush1.msra.mxu0 0.0
  %1213 = vmatprep.subr.mxu0 0.0
  %1214 = vmatpush1.msra.mxu0 0.0
  %1215 = vmatprep.subr.mxu0 0.0
  %1216 = vmatpush1.msra.mxu0 0.0
  %1217 = vmatprep.mubr.f32.mxu0 0.0
  %1218 = vmatmul.mubr.f32.gmra.mrb[0].mxu0 %v1017
  %v1219 = vpop.f32.mrb[0].mxu0
  %v1220 = vadd.f32 0.0, %v1219
  %v1221 = vpop.f32.mrb[0].mxu0
  %v1222 = vadd.f32 0.0, %v1221
  %1223 = vdwg.mxu0
  %v1224 = vadd.f32 %v1013, %v1149
  %v1225 = vadd.f32 %v1014, %v1151
  %v1226 = vadd.f32 %v1015, %v1220
  %v1227 = vadd.f32 %v1016, %v1222
  %v1228 = vxor.u32 %v1224, 2147483648
  %v1229 = vmul.f32 %v1228, 1.442695
  %v1230 = vpow.pop %v1229
  %v1231 = vadd.f32 %v1230, 1.0
  %v1232 = vrcp.pop %v1231
  %v1233 = vmul.f32 1.0, %v1232
  %v1234 = vxor.u32 %v1225, 2147483648
  %v1235 = vmul.f32 %v1234, 1.442695
  %v1236 = vpow.pop %v1235
  %v1237 = vadd.f32 %v1236, 1.0
  %v1238 = vrcp.pop %v1237
  %v1239 = vmul.f32 1.0, %v1238
  %v1240 = vtanh.pop %v1226
  %v1241 = vxor.u32 %v1227, 2147483648
  %v1242 = vmul.f32 %v1241, 1.442695
  %v1243 = vpow.pop %v1242
  %v1244 = vadd.f32 %v1243, 1.0
  %v1245 = vrcp.pop %v1244
  %v1246 = vmul.f32 1.0, %v1245
  %v1247 = vld [vmem:[#allocation3] sm:$0xff]
  %v1248 = vmul.f32 %v1239, %v1247
  %v1249 = vmul.f32 %v1233, %v1240
  %v1250 = vadd.f32 %v1248, %v1249
  %v1251 = vtanh.pop %v1250
  %v1252 = vmul.f32 %v1246, %v1251
  %1253 = vst [vmem:[#allocation3] sm:$0xff] %v1250
  %1254 = vst [vmem:[#allocation2] sm:$0xff] %v1252
  %s1255 = scalar_lea.vmem %s4, 32
  %1256 = vst [vmem:[%s1255] sm:$0xff] %v1252
  %s1257 = scalar_lea.vmem %s5, 32
  %1258 = vst [vmem:[%s1257] sm:$0xff] %v1250
  %s1259 = scalar_lea.vmem %s0, 160
  %v1260 = vld [vmem:[%s1259] sm:$0xff]
  %v1261 = vld [vmem:[%s1259 + $0x8] sm:$0xff]
  %v1262 = vld [vmem:[%s1259 + $0x10] sm:$0xff]
  %v1263 = vld [vmem:[%s1259 + $0x18] sm:$0xff]
  %v1264 = vld [vmem:[#allocation2] sm:$0xff]
  %v1265 = vld [vmem:[%s3] sm:$0xff]
  %v1266 = vld [vmem:[%s3 + $0x8] sm:$0xff]
  %v1267 = vld [vmem:[%s3 + $0x10] sm:$0xff]
  %v1268 = vld [vmem:[%s3 + $0x18] sm:$0xff]
  %v1269 = vld [vmem:[%s3 + $0x20] sm:$0xff]
  %v1270 = vld [vmem:[%s3 + $0x28] sm:$0xff]
  %v1271 = vld [vmem:[%s3 + $0x30] sm:$0xff]
  %v1272 = vld [vmem:[%s3 + $0x38] sm:$0xff]
  %v1273 = vld [vmem:[%s3 + $0x40] sm:$0xff]
  %v1274 = vld [vmem:[%s3 + $0x48] sm:$0xff]
  %v1275 = vld [vmem:[%s3 + $0x50] sm:$0xff]
  %v1276 = vld [vmem:[%s3 + $0x58] sm:$0xff]
  %v1277 = vld [vmem:[%s3 + $0x60] sm:$0xff]
  %v1278 = vld [vmem:[%s3 + $0x68] sm:$0xff]
  %v1279 = vld [vmem:[%s3 + $0x70] sm:$0xff]
  %v1280 = vld [vmem:[%s3 + $0x78] sm:$0xff]
  %v1281 = vld [vmem:[%s3 + $0x80] sm:$0xff]
  %v1282 = vld [vmem:[%s3 + $0x88] sm:$0xff]
  %v1283 = vld [vmem:[%s3 + $0x90] sm:$0xff]
  %v1284 = vld [vmem:[%s3 + $0x98] sm:$0xff]
  %v1285 = vld [vmem:[%s3 + $0xa0] sm:$0xff]
  %v1286 = vld [vmem:[%s3 + $0xa8] sm:$0xff]
  %v1287 = vld [vmem:[%s3 + $0xb0] sm:$0xff]
  %v1288 = vld [vmem:[%s3 + $0xb8] sm:$0xff]
  %v1289 = vld [vmem:[%s3 + $0xc0] sm:$0xff]
  %v1290 = vld [vmem:[%s3 + $0xc8] sm:$0xff]
  %v1291 = vld [vmem:[%s3 + $0xd0] sm:$0xff]
  %v1292 = vld [vmem:[%s3 + $0xd8] sm:$0xff]
  %v1293 = vld [vmem:[%s3 + $0xe0] sm:$0xff]
  %v1294 = vld [vmem:[%s3 + $0xe8] sm:$0xff]
  %v1295 = vld [vmem:[%s3 + $0xf0] sm:$0xff]
  %v1296 = vld [vmem:[%s3 + $0xf8] sm:$0xff]
  %v1297 = vld [vmem:[%s3 + $0x100] sm:$0xff]
  %v1298 = vld [vmem:[%s3 + $0x108] sm:$0xff]
  %v1299 = vld [vmem:[%s3 + $0x110] sm:$0xff]
  %v1300 = vld [vmem:[%s3 + $0x118] sm:$0xff]
  %v1301 = vld [vmem:[%s3 + $0x120] sm:$0xff]
  %v1302 = vld [vmem:[%s3 + $0x128] sm:$0xff]
  %v1303 = vld [vmem:[%s3 + $0x130] sm:$0xff]
  %v1304 = vld [vmem:[%s3 + $0x138] sm:$0xff]
  %v1305 = vld [vmem:[%s3 + $0x140] sm:$0xff]
  %v1306 = vld [vmem:[%s3 + $0x148] sm:$0xff]
  %v1307 = vld [vmem:[%s3 + $0x150] sm:$0xff]
  %v1308 = vld [vmem:[%s3 + $0x158] sm:$0xff]
  %v1309 = vld [vmem:[%s3 + $0x160] sm:$0xff]
  %v1310 = vld [vmem:[%s3 + $0x168] sm:$0xff]
  %v1311 = vld [vmem:[%s3 + $0x170] sm:$0xff]
  %v1312 = vld [vmem:[%s3 + $0x178] sm:$0xff]
  %v1313 = vld [vmem:[%s3 + $0x180] sm:$0xff]
  %v1314 = vld [vmem:[%s3 + $0x188] sm:$0xff]
  %v1315 = vld [vmem:[%s3 + $0x190] sm:$0xff]
  %v1316 = vld [vmem:[%s3 + $0x198] sm:$0xff]
  %v1317 = vld [vmem:[%s3 + $0x1a0] sm:$0xff]
  %v1318 = vld [vmem:[%s3 + $0x1a8] sm:$0xff]
  %v1319 = vld [vmem:[%s3 + $0x1b0] sm:$0xff]
  %v1320 = vld [vmem:[%s3 + $0x1b8] sm:$0xff]
  %v1321 = vld [vmem:[%s3 + $0x1c0] sm:$0xff]
  %v1322 = vld [vmem:[%s3 + $0x1c8] sm:$0xff]
  %v1323 = vld [vmem:[%s3 + $0x1d0] sm:$0xff]
  %v1324 = vld [vmem:[%s3 + $0x1d8] sm:$0xff]
  %v1325 = vld [vmem:[%s3 + $0x1e0] sm:$0xff]
  %v1326 = vld [vmem:[%s3 + $0x1e8] sm:$0xff]
  %v1327 = vld [vmem:[%s3 + $0x1f0] sm:$0xff]
  %v1328 = vld [vmem:[%s3 + $0x1f8] sm:$0xff]
  %1329 = vmatprep.subr.mxu0 %v1266
  %1330 = vmatpush1.msra.mxu0 %v1265
  %1331 = vmatprep.subr.mxu0 %v1270
  %1332 = vmatpush1.msra.mxu0 %v1269
  %1333 = vmatprep.subr.mxu0 %v1274
  %1334 = vmatpush1.msra.mxu0 %v1273
  %1335 = vmatprep.subr.mxu0 %v1278
  %1336 = vmatpush1.msra.mxu0 %v1277
  %1337 = vmatprep.subr.mxu0 %v1282
  %1338 = vmatpush1.msra.mxu0 %v1281
  %1339 = vmatprep.subr.mxu0 %v1286
  %1340 = vmatpush1.msra.mxu0 %v1285
  %1341 = vmatprep.subr.mxu0 %v1290
  %1342 = vmatpush1.msra.mxu0 %v1289
  %1343 = vmatprep.subr.mxu0 %v1294
  %1344 = vmatpush1.msra.mxu0 %v1293
  %1345 = vmatprep.subr.mxu0 %v1298
  %1346 = vmatpush1.msra.mxu0 %v1297
  %1347 = vmatprep.subr.mxu0 %v1302
  %1348 = vmatpush1.msra.mxu0 %v1301
  %1349 = vmatprep.subr.mxu0 %v1306
  %1350 = vmatpush1.msra.mxu0 %v1305
  %1351 = vmatprep.subr.mxu0 %v1310
  %1352 = vmatpush1.msra.mxu0 %v1309
  %1353 = vmatprep.subr.mxu0 %v1314
  %1354 = vmatpush1.msra.mxu0 %v1313
  %1355 = vmatprep.subr.mxu0 %v1318
  %1356 = vmatpush1.msra.mxu0 %v1317
  %1357 = vmatprep.subr.mxu0 %v1322
  %1358 = vmatpush1.msra.mxu0 %v1321
  %1359 = vmatprep.subr.mxu0 %v1326
  %1360 = vmatpush1.msra.mxu0 %v1325
  %1361 = vmatprep.subr.mxu0 0.0
  %1362 = vmatpush1.msra.mxu0 0.0
  %1363 = vmatprep.subr.mxu0 0.0
  %1364 = vmatpush1.msra.mxu0 0.0
  %1365 = vmatprep.subr.mxu0 0.0
  %1366 = vmatpush1.msra.mxu0 0.0
  %1367 = vmatprep.subr.mxu0 0.0
  %1368 = vmatpush1.msra.mxu0 0.0
  %1369 = vmatprep.subr.mxu0 0.0
  %1370 = vmatpush1.msra.mxu0 0.0
  %1371 = vmatprep.subr.mxu0 0.0
  %1372 = vmatpush1.msra.mxu0 0.0
  %1373 = vmatprep.subr.mxu0 0.0
  %1374 = vmatpush1.msra.mxu0 0.0
  %1375 = vmatprep.subr.mxu0 0.0
  %1376 = vmatpush1.msra.mxu0 0.0
  %1377 = vmatprep.subr.mxu0 0.0
  %1378 = vmatpush1.msra.mxu0 0.0
  %1379 = vmatprep.subr.mxu0 0.0
  %1380 = vmatpush1.msra.mxu0 0.0
  %1381 = vmatprep.subr.mxu0 0.0
  %1382 = vmatpush1.msra.mxu0 0.0
  %1383 = vmatprep.subr.mxu0 0.0
  %1384 = vmatpush1.msra.mxu0 0.0
  %1385 = vmatprep.subr.mxu0 0.0
  %1386 = vmatpush1.msra.mxu0 0.0
  %1387 = vmatprep.subr.mxu0 0.0
  %1388 = vmatpush1.msra.mxu0 0.0
  %1389 = vmatprep.subr.mxu0 0.0
  %1390 = vmatpush1.msra.mxu0 0.0
  %1391 = vmatprep.subr.mxu0 0.0
  %1392 = vmatpush1.msra.mxu0 0.0
  %1393 = vmatprep.mubr.f32.mxu0 0.0
  %1394 = vmatmul.mubr.f32.gmra.mrb[0].mxu0 %v1264
  %v1395 = vpop.f32.mrb[0].mxu0
  %v1396 = vadd.f32 0.0, %v1395
  %v1397 = vpop.f32.mrb[0].mxu0
  %v1398 = vadd.f32 0.0, %v1397
  %1399 = vdwg.mxu0
  %1400 = vmatprep.subr.mxu0 %v1268
  %1401 = vmatpush1.msra.mxu0 %v1267
  %1402 = vmatprep.subr.mxu0 %v1272
  %1403 = vmatpush1.msra.mxu0 %v1271
  %1404 = vmatprep.subr.mxu0 %v1276
  %1405 = vmatpush1.msra.mxu0 %v1275
  %1406 = vmatprep.subr.mxu0 %v1280
  %1407 = vmatpush1.msra.mxu0 %v1279
  %1408 = vmatprep.subr.mxu0 %v1284
  %1409 = vmatpush1.msra.mxu0 %v1283
  %1410 = vmatprep.subr.mxu0 %v1288
  %1411 = vmatpush1.msra.mxu0 %v1287
  %1412 = vmatprep.subr.mxu0 %v1292
  %1413 = vmatpush1.msra.mxu0 %v1291
  %1414 = vmatprep.subr.mxu0 %v1296
  %1415 = vmatpush1.msra.mxu0 %v1295
  %1416 = vmatprep.subr.mxu0 %v1300
  %1417 = vmatpush1.msra.mxu0 %v1299
  %1418 = vmatprep.subr.mxu0 %v1304
  %1419 = vmatpush1.msra.mxu0 %v1303
  %1420 = vmatprep.subr.mxu0 %v1308
  %1421 = vmatpush1.msra.mxu0 %v1307
  %1422 = vmatprep.subr.mxu0 %v1312
  %1423 = vmatpush1.msra.mxu0 %v1311
  %1424 = vmatprep.subr.mxu0 %v1316
  %1425 = vmatpush1.msra.mxu0 %v1315
  %1426 = vmatprep.subr.mxu0 %v1320
  %1427 = vmatpush1.msra.mxu0 %v1319
  %1428 = vmatprep.subr.mxu0 %v1324
  %1429 = vmatpush1.msra.mxu0 %v1323
  %1430 = vmatprep.subr.mxu0 %v1328
  %1431 = vmatpush1.msra.mxu0 %v1327
  %1432 = vmatprep.subr.mxu0 0.0
  %1433 = vmatpush1.msra.mxu0 0.0
  %1434 = vmatprep.subr.mxu0 0.0
  %1435 = vmatpush1.msra.mxu0 0.0
  %1436 = vmatprep.subr.mxu0 0.0
  %1437 = vmatpush1.msra.mxu0 0.0
  %1438 = vmatprep.subr.mxu0 0.0
  %1439 = vmatpush1.msra.mxu0 0.0
  %1440 = vmatprep.subr.mxu0 0.0
  %1441 = vmatpush1.msra.mxu0 0.0
  %1442 = vmatprep.subr.mxu0 0.0
  %1443 = vmatpush1.msra.mxu0 0.0
  %1444 = vmatprep.subr.mxu0 0.0
  %1445 = vmatpush1.msra.mxu0 0.0
  %1446 = vmatprep.subr.mxu0 0.0
  %1447 = vmatpush1.msra.mxu0 0.0
  %1448 = vmatprep.subr.mxu0 0.0
  %1449 = vmatpush1.msra.mxu0 0.0
  %1450 = vmatprep.subr.mxu0 0.0
  %1451 = vmatpush1.msra.mxu0 0.0
  %1452 = vmatprep.subr.mxu0 0.0
  %1453 = vmatpush1.msra.mxu0 0.0
  %1454 = vmatprep.subr.mxu0 0.0
  %1455 = vmatpush1.msra.mxu0 0.0
  %1456 = vmatprep.subr.mxu0 0.0
  %1457 = vmatpush1.msra.mxu0 0.0
  %1458 = vmatprep.subr.mxu0 0.0
  %1459 = vmatpush1.msra.mxu0 0.0
  %1460 = vmatprep.subr.mxu0 0.0
  %1461 = vmatpush1.msra.mxu0 0.0
  %1462 = vmatprep.subr.mxu0 0.0
  %1463 = vmatpush1.msra.mxu0 0.0
  %1464 = vmatprep.mubr.f32.mxu0 0.0
  %1465 = vmatmul.mubr.f32.gmra.mrb[0].mxu0 %v1264
  %v1466 = vpop.f32.mrb[0].mxu0
  %v1467 = vadd.f32 0.0, %v1466
  %v1468 = vpop.f32.mrb[0].mxu0
  %v1469 = vadd.f32 0.0, %v1468
  %1470 = vdwg.mxu0
  %v1471 = vadd.f32 %v1260, %v1396
  %v1472 = vadd.f32 %v1261, %v1398
  %v1473 = vadd.f32 %v1262, %v1467
  %v1474 = vadd.f32 %v1263, %v1469
  %v1475 = vxor.u32 %v1471, 2147483648
  %v1476 = vmul.f32 %v1475, 1.442695
  %v1477 = vpow.pop %v1476
  %v1478 = vadd.f32 %v1477, 1.0
  %v1479 = vrcp.pop %v1478
  %v1480 = vmul.f32 1.0, %v1479
  %v1481 = vxor.u32 %v1472, 2147483648
  %v1482 = vmul.f32 %v1481, 1.442695
  %v1483 = vpow.pop %v1482
  %v1484 = vadd.f32 %v1483, 1.0
  %v1485 = vrcp.pop %v1484
  %v1486 = vmul.f32 1.0, %v1485
  %v1487 = vtanh.pop %v1473
  %v1488 = vxor.u32 %v1474, 2147483648
  %v1489 = vmul.f32 %v1488, 1.442695
  %v1490 = vpow.pop %v1489
  %v1491 = vadd.f32 %v1490, 1.0
  %v1492 = vrcp.pop %v1491
  %v1493 = vmul.f32 1.0, %v1492
  %v1494 = vld [vmem:[#allocation3] sm:$0xff]
  %v1495 = vmul.f32 %v1486, %v1494
  %v1496 = vmul.f32 %v1480, %v1487
  %v1497 = vadd.f32 %v1495, %v1496
  %v1498 = vtanh.pop %v1497
  %v1499 = vmul.f32 %v1493, %v1498
  %1500 = vst [vmem:[#allocation3] sm:$0xff] %v1497
  %1501 = vst [vmem:[#allocation2] sm:$0xff] %v1499
  %s1502 = scalar_lea.vmem %s4, 40
  %1503 = vst [vmem:[%s1502] sm:$0xff] %v1499
  %s1504 = scalar_lea.vmem %s5, 40
  %1505 = vst [vmem:[%s1504] sm:$0xff] %v1497
  %s1506 = scalar_lea.vmem %s0, 192
  %v1507 = vld [vmem:[%s1506] sm:$0xff]
  %v1508 = vld [vmem:[%s1506 + $0x8] sm:$0xff]
  %v1509 = vld [vmem:[%s1506 + $0x10] sm:$0xff]
  %v1510 = vld [vmem:[%s1506 + $0x18] sm:$0xff]
  %v1511 = vld [vmem:[#allocation2] sm:$0xff]
  %v1512 = vld [vmem:[%s3] sm:$0xff]
  %v1513 = vld [vmem:[%s3 + $0x8] sm:$0xff]
  %v1514 = vld [vmem:[%s3 + $0x10] sm:$0xff]
  %v1515 = vld [vmem:[%s3 + $0x18] sm:$0xff]
  %v1516 = vld [vmem:[%s3 + $0x20] sm:$0xff]
  %v1517 = vld [vmem:[%s3 + $0x28] sm:$0xff]
  %v1518 = vld [vmem:[%s3 + $0x30] sm:$0xff]
  %v1519 = vld [vmem:[%s3 + $0x38] sm:$0xff]
  %v1520 = vld [vmem:[%s3 + $0x40] sm:$0xff]
  %v1521 = vld [vmem:[%s3 + $0x48] sm:$0xff]
  %v1522 = vld [vmem:[%s3 + $0x50] sm:$0xff]
  %v1523 = vld [vmem:[%s3 + $0x58] sm:$0xff]
  %v1524 = vld [vmem:[%s3 + $0x60] sm:$0xff]
  %v1525 = vld [vmem:[%s3 + $0x68] sm:$0xff]
  %v1526 = vld [vmem:[%s3 + $0x70] sm:$0xff]
  %v1527 = vld [vmem:[%s3 + $0x78] sm:$0xff]
  %v1528 = vld [vmem:[%s3 + $0x80] sm:$0xff]
  %v1529 = vld [vmem:[%s3 + $0x88] sm:$0xff]
  %v1530 = vld [vmem:[%s3 + $0x90] sm:$0xff]
  %v1531 = vld [vmem:[%s3 + $0x98] sm:$0xff]
  %v1532 = vld [vmem:[%s3 + $0xa0] sm:$0xff]
  %v1533 = vld [vmem:[%s3 + $0xa8] sm:$0xff]
  %v1534 = vld [vmem:[%s3 + $0xb0] sm:$0xff]
  %v1535 = vld [vmem:[%s3 + $0xb8] sm:$0xff]
  %v1536 = vld [vmem:[%s3 + $0xc0] sm:$0xff]
  %v1537 = vld [vmem:[%s3 + $0xc8] sm:$0xff]
  %v1538 = vld [vmem:[%s3 + $0xd0] sm:$0xff]
  %v1539 = vld [vmem:[%s3 + $0xd8] sm:$0xff]
  %v1540 = vld [vmem:[%s3 + $0xe0] sm:$0xff]
  %v1541 = vld [vmem:[%s3 + $0xe8] sm:$0xff]
  %v1542 = vld [vmem:[%s3 + $0xf0] sm:$0xff]
  %v1543 = vld [vmem:[%s3 + $0xf8] sm:$0xff]
  %v1544 = vld [vmem:[%s3 + $0x100] sm:$0xff]
  %v1545 = vld [vmem:[%s3 + $0x108] sm:$0xff]
  %v1546 = vld [vmem:[%s3 + $0x110] sm:$0xff]
  %v1547 = vld [vmem:[%s3 + $0x118] sm:$0xff]
  %v1548 = vld [vmem:[%s3 + $0x120] sm:$0xff]
  %v1549 = vld [vmem:[%s3 + $0x128] sm:$0xff]
  %v1550 = vld [vmem:[%s3 + $0x130] sm:$0xff]
  %v1551 = vld [vmem:[%s3 + $0x138] sm:$0xff]
  %v1552 = vld [vmem:[%s3 + $0x140] sm:$0xff]
  %v1553 = vld [vmem:[%s3 + $0x148] sm:$0xff]
  %v1554 = vld [vmem:[%s3 + $0x150] sm:$0xff]
  %v1555 = vld [vmem:[%s3 + $0x158] sm:$0xff]
  %v1556 = vld [vmem:[%s3 + $0x160] sm:$0xff]
  %v1557 = vld [vmem:[%s3 + $0x168] sm:$0xff]
  %v1558 = vld [vmem:[%s3 + $0x170] sm:$0xff]
  %v1559 = vld [vmem:[%s3 + $0x178] sm:$0xff]
  %v1560 = vld [vmem:[%s3 + $0x180] sm:$0xff]
  %v1561 = vld [vmem:[%s3 + $0x188] sm:$0xff]
  %v1562 = vld [vmem:[%s3 + $0x190] sm:$0xff]
  %v1563 = vld [vmem:[%s3 + $0x198] sm:$0xff]
  %v1564 = vld [vmem:[%s3 + $0x1a0] sm:$0xff]
  %v1565 = vld [vmem:[%s3 + $0x1a8] sm:$0xff]
  %v1566 = vld [vmem:[%s3 + $0x1b0] sm:$0xff]
  %v1567 = vld [vmem:[%s3 + $0x1b8] sm:$0xff]
  %v1568 = vld [vmem:[%s3 + $0x1c0] sm:$0xff]
  %v1569 = vld [vmem:[%s3 + $0x1c8] sm:$0xff]
  %v1570 = vld [vmem:[%s3 + $0x1d0] sm:$0xff]
  %v1571 = vld [vmem:[%s3 + $0x1d8] sm:$0xff]
  %v1572 = vld [vmem:[%s3 + $0x1e0] sm:$0xff]
  %v1573 = vld [vmem:[%s3 + $0x1e8] sm:$0xff]
  %v1574 = vld [vmem:[%s3 + $0x1f0] sm:$0xff]
  %v1575 = vld [vmem:[%s3 + $0x1f8] sm:$0xff]
  %1576 = vmatprep.subr.mxu0 %v1513
  %1577 = vmatpush1.msra.mxu0 %v1512
  %1578 = vmatprep.subr.mxu0 %v1517
  %1579 = vmatpush1.msra.mxu0 %v1516
  %1580 = vmatprep.subr.mxu0 %v1521
  %1581 = vmatpush1.msra.mxu0 %v1520
  %1582 = vmatprep.subr.mxu0 %v1525
  %1583 = vmatpush1.msra.mxu0 %v1524
  %1584 = vmatprep.subr.mxu0 %v1529
  %1585 = vmatpush1.msra.mxu0 %v1528
  %1586 = vmatprep.subr.mxu0 %v1533
  %1587 = vmatpush1.msra.mxu0 %v1532
  %1588 = vmatprep.subr.mxu0 %v1537
  %1589 = vmatpush1.msra.mxu0 %v1536
  %1590 = vmatprep.subr.mxu0 %v1541
  %1591 = vmatpush1.msra.mxu0 %v1540
  %1592 = vmatprep.subr.mxu0 %v1545
  %1593 = vmatpush1.msra.mxu0 %v1544
  %1594 = vmatprep.subr.mxu0 %v1549
  %1595 = vmatpush1.msra.mxu0 %v1548
  %1596 = vmatprep.subr.mxu0 %v1553
  %1597 = vmatpush1.msra.mxu0 %v1552
  %1598 = vmatprep.subr.mxu0 %v1557
  %1599 = vmatpush1.msra.mxu0 %v1556
  %1600 = vmatprep.subr.mxu0 %v1561
  %1601 = vmatpush1.msra.mxu0 %v1560
  %1602 = vmatprep.subr.mxu0 %v1565
  %1603 = vmatpush1.msra.mxu0 %v1564
  %1604 = vmatprep.subr.mxu0 %v1569
  %1605 = vmatpush1.msra.mxu0 %v1568
  %1606 = vmatprep.subr.mxu0 %v1573
  %1607 = vmatpush1.msra.mxu0 %v1572
  %1608 = vmatprep.subr.mxu0 0.0
  %1609 = vmatpush1.msra.mxu0 0.0
  %1610 = vmatprep.subr.mxu0 0.0
  %1611 = vmatpush1.msra.mxu0 0.0
  %1612 = vmatprep.subr.mxu0 0.0
  %1613 = vmatpush1.msra.mxu0 0.0
  %1614 = vmatprep.subr.mxu0 0.0
  %1615 = vmatpush1.msra.mxu0 0.0
  %1616 = vmatprep.subr.mxu0 0.0
  %1617 = vmatpush1.msra.mxu0 0.0
  %1618 = vmatprep.subr.mxu0 0.0
  %1619 = vmatpush1.msra.mxu0 0.0
  %1620 = vmatprep.subr.mxu0 0.0
  %1621 = vmatpush1.msra.mxu0 0.0
  %1622 = vmatprep.subr.mxu0 0.0
  %1623 = vmatpush1.msra.mxu0 0.0
  %1624 = vmatprep.subr.mxu0 0.0
  %1625 = vmatpush1.msra.mxu0 0.0
  %1626 = vmatprep.subr.mxu0 0.0
  %1627 = vmatpush1.msra.mxu0 0.0
  %1628 = vmatprep.subr.mxu0 0.0
  %1629 = vmatpush1.msra.mxu0 0.0
  %1630 = vmatprep.subr.mxu0 0.0
  %1631 = vmatpush1.msra.mxu0 0.0
  %1632 = vmatprep.subr.mxu0 0.0
  %1633 = vmatpush1.msra.mxu0 0.0
  %1634 = vmatprep.subr.mxu0 0.0
  %1635 = vmatpush1.msra.mxu0 0.0
  %1636 = vmatprep.subr.mxu0 0.0
  %1637 = vmatpush1.msra.mxu0 0.0
  %1638 = vmatprep.subr.mxu0 0.0
  %1639 = vmatpush1.msra.mxu0 0.0
  %1640 = vmatprep.mubr.f32.mxu0 0.0
  %1641 = vmatmul.mubr.f32.gmra.mrb[0].mxu0 %v1511
  %v1642 = vpop.f32.mrb[0].mxu0
  %v1643 = vadd.f32 0.0, %v1642
  %v1644 = vpop.f32.mrb[0].mxu0
  %v1645 = vadd.f32 0.0, %v1644
  %1646 = vdwg.mxu0
  %1647 = vmatprep.subr.mxu0 %v1515
  %1648 = vmatpush1.msra.mxu0 %v1514
  %1649 = vmatprep.subr.mxu0 %v1519
  %1650 = vmatpush1.msra.mxu0 %v1518
  %1651 = vmatprep.subr.mxu0 %v1523
  %1652 = vmatpush1.msra.mxu0 %v1522
  %1653 = vmatprep.subr.mxu0 %v1527
  %1654 = vmatpush1.msra.mxu0 %v1526
  %1655 = vmatprep.subr.mxu0 %v1531
  %1656 = vmatpush1.msra.mxu0 %v1530
  %1657 = vmatprep.subr.mxu0 %v1535
  %1658 = vmatpush1.msra.mxu0 %v1534
  %1659 = vmatprep.subr.mxu0 %v1539
  %1660 = vmatpush1.msra.mxu0 %v1538
  %1661 = vmatprep.subr.mxu0 %v1543
  %1662 = vmatpush1.msra.mxu0 %v1542
  %1663 = vmatprep.subr.mxu0 %v1547
  %1664 = vmatpush1.msra.mxu0 %v1546
  %1665 = vmatprep.subr.mxu0 %v1551
  %1666 = vmatpush1.msra.mxu0 %v1550
  %1667 = vmatprep.subr.mxu0 %v1555
  %1668 = vmatpush1.msra.mxu0 %v1554
  %1669 = vmatprep.subr.mxu0 %v1559
  %1670 = vmatpush1.msra.mxu0 %v1558
  %1671 = vmatprep.subr.mxu0 %v1563
  %1672 = vmatpush1.msra.mxu0 %v1562
  %1673 = vmatprep.subr.mxu0 %v1567
  %1674 = vmatpush1.msra.mxu0 %v1566
  %1675 = vmatprep.subr.mxu0 %v1571
  %1676 = vmatpush1.msra.mxu0 %v1570
  %1677 = vmatprep.subr.mxu0 %v1575
  %1678 = vmatpush1.msra.mxu0 %v1574
  %1679 = vmatprep.subr.mxu0 0.0
  %1680 = vmatpush1.msra.mxu0 0.0
  %1681 = vmatprep.subr.mxu0 0.0
  %1682 = vmatpush1.msra.mxu0 0.0
  %1683 = vmatprep.subr.mxu0 0.0
  %1684 = vmatpush1.msra.mxu0 0.0
  %1685 = vmatprep.subr.mxu0 0.0
  %1686 = vmatpush1.msra.mxu0 0.0
  %1687 = vmatprep.subr.mxu0 0.0
  %1688 = vmatpush1.msra.mxu0 0.0
  %1689 = vmatprep.subr.mxu0 0.0
  %1690 = vmatpush1.msra.mxu0 0.0
  %1691 = vmatprep.subr.mxu0 0.0
  %1692 = vmatpush1.msra.mxu0 0.0
  %1693 = vmatprep.subr.mxu0 0.0
  %1694 = vmatpush1.msra.mxu0 0.0
  %1695 = vmatprep.subr.mxu0 0.0
  %1696 = vmatpush1.msra.mxu0 0.0
  %1697 = vmatprep.subr.mxu0 0.0
  %1698 = vmatpush1.msra.mxu0 0.0
  %1699 = vmatprep.subr.mxu0 0.0
  %1700 = vmatpush1.msra.mxu0 0.0
  %1701 = vmatprep.subr.mxu0 0.0
  %1702 = vmatpush1.msra.mxu0 0.0
  %1703 = vmatprep.subr.mxu0 0.0
  %1704 = vmatpush1.msra.mxu0 0.0
  %1705 = vmatprep.subr.mxu0 0.0
  %1706 = vmatpush1.msra.mxu0 0.0
  %1707 = vmatprep.subr.mxu0 0.0
  %1708 = vmatpush1.msra.mxu0 0.0
  %1709 = vmatprep.subr.mxu0 0.0
  %1710 = vmatpush1.msra.mxu0 0.0
  %1711 = vmatprep.mubr.f32.mxu0 0.0
  %1712 = vmatmul.mubr.f32.gmra.mrb[0].mxu0 %v1511
  %v1713 = vpop.f32.mrb[0].mxu0
  %v1714 = vadd.f32 0.0, %v1713
  %v1715 = vpop.f32.mrb[0].mxu0
  %v1716 = vadd.f32 0.0, %v1715
  %1717 = vdwg.mxu0
  %v1718 = vadd.f32 %v1507, %v1643
  %v1719 = vadd.f32 %v1508, %v1645
  %v1720 = vadd.f32 %v1509, %v1714
  %v1721 = vadd.f32 %v1510, %v1716
  %v1722 = vxor.u32 %v1718, 2147483648
  %v1723 = vmul.f32 %v1722, 1.442695
  %v1724 = vpow.pop %v1723
  %v1725 = vadd.f32 %v1724, 1.0
  %v1726 = vrcp.pop %v1725
  %v1727 = vmul.f32 1.0, %v1726
  %v1728 = vxor.u32 %v1719, 2147483648
  %v1729 = vmul.f32 %v1728, 1.442695
  %v1730 = vpow.pop %v1729
  %v1731 = vadd.f32 %v1730, 1.0
  %v1732 = vrcp.pop %v1731
  %v1733 = vmul.f32 1.0, %v1732
  %v1734 = vtanh.pop %v1720
  %v1735 = vxor.u32 %v1721, 2147483648
  %v1736 = vmul.f32 %v1735, 1.442695
  %v1737 = vpow.pop %v1736
  %v1738 = vadd.f32 %v1737, 1.0
  %v1739 = vrcp.pop %v1738
  %v1740 = vmul.f32 1.0, %v1739
  %v1741 = vld [vmem:[#allocation3] sm:$0xff]
  %v1742 = vmul.f32 %v1733, %v1741
  %v1743 = vmul.f32 %v1727, %v1734
  %v1744 = vadd.f32 %v1742, %v1743
  %v1745 = vtanh.pop %v1744
  %v1746 = vmul.f32 %v1740, %v1745
  %1747 = vst [vmem:[#allocation3] sm:$0xff] %v1744
  %1748 = vst [vmem:[#allocation2] sm:$0xff] %v1746
  %s1749 = scalar_lea.vmem %s4, 48
  %1750 = vst [vmem:[%s1749] sm:$0xff] %v1746
  %s1751 = scalar_lea.vmem %s5, 48
  %1752 = vst [vmem:[%s1751] sm:$0xff] %v1744
  %s1753 = scalar_lea.vmem %s0, 224
  %v1754 = vld [vmem:[%s1753] sm:$0xff]
  %v1755 = vld [vmem:[%s1753 + $0x8] sm:$0xff]
  %v1756 = vld [vmem:[%s1753 + $0x10] sm:$0xff]
  %v1757 = vld [vmem:[%s1753 + $0x18] sm:$0xff]
  %v1758 = vld [vmem:[#allocation2] sm:$0xff]
  %v1759 = vld [vmem:[%s3] sm:$0xff]
  %v1760 = vld [vmem:[%s3 + $0x8] sm:$0xff]
  %v1761 = vld [vmem:[%s3 + $0x10] sm:$0xff]
  %v1762 = vld [vmem:[%s3 + $0x18] sm:$0xff]
  %v1763 = vld [vmem:[%s3 + $0x20] sm:$0xff]
  %v1764 = vld [vmem:[%s3 + $0x28] sm:$0xff]
  %v1765 = vld [vmem:[%s3 + $0x30] sm:$0xff]
  %v1766 = vld [vmem:[%s3 + $0x38] sm:$0xff]
  %v1767 = vld [vmem:[%s3 + $0x40] sm:$0xff]
  %v1768 = vld [vmem:[%s3 + $0x48] sm:$0xff]
  %v1769 = vld [vmem:[%s3 + $0x50] sm:$0xff]
  %v1770 = vld [vmem:[%s3 + $0x58] sm:$0xff]
  %v1771 = vld [vmem:[%s3 + $0x60] sm:$0xff]
  %v1772 = vld [vmem:[%s3 + $0x68] sm:$0xff]
  %v1773 = vld [vmem:[%s3 + $0x70] sm:$0xff]
  %v1774 = vld [vmem:[%s3 + $0x78] sm:$0xff]
  %v1775 = vld [vmem:[%s3 + $0x80] sm:$0xff]
  %v1776 = vld [vmem:[%s3 + $0x88] sm:$0xff]
  %v1777 = vld [vmem:[%s3 + $0x90] sm:$0xff]
  %v1778 = vld [vmem:[%s3 + $0x98] sm:$0xff]
  %v1779 = vld [vmem:[%s3 + $0xa0] sm:$0xff]
  %v1780 = vld [vmem:[%s3 + $0xa8] sm:$0xff]
  %v1781 = vld [vmem:[%s3 + $0xb0] sm:$0xff]
  %v1782 = vld [vmem:[%s3 + $0xb8] sm:$0xff]
  %v1783 = vld [vmem:[%s3 + $0xc0] sm:$0xff]
  %v1784 = vld [vmem:[%s3 + $0xc8] sm:$0xff]
  %v1785 = vld [vmem:[%s3 + $0xd0] sm:$0xff]
  %v1786 = vld [vmem:[%s3 + $0xd8] sm:$0xff]
  %v1787 = vld [vmem:[%s3 + $0xe0] sm:$0xff]
  %v1788 = vld [vmem:[%s3 + $0xe8] sm:$0xff]
  %v1789 = vld [vmem:[%s3 + $0xf0] sm:$0xff]
  %v1790 = vld [vmem:[%s3 + $0xf8] sm:$0xff]
  %v1791 = vld [vmem:[%s3 + $0x100] sm:$0xff]
  %v1792 = vld [vmem:[%s3 + $0x108] sm:$0xff]
  %v1793 = vld [vmem:[%s3 + $0x110] sm:$0xff]
  %v1794 = vld [vmem:[%s3 + $0x118] sm:$0xff]
  %v1795 = vld [vmem:[%s3 + $0x120] sm:$0xff]
  %v1796 = vld [vmem:[%s3 + $0x128] sm:$0xff]
  %v1797 = vld [vmem:[%s3 + $0x130] sm:$0xff]
  %v1798 = vld [vmem:[%s3 + $0x138] sm:$0xff]
  %v1799 = vld [vmem:[%s3 + $0x140] sm:$0xff]
  %v1800 = vld [vmem:[%s3 + $0x148] sm:$0xff]
  %v1801 = vld [vmem:[%s3 + $0x150] sm:$0xff]
  %v1802 = vld [vmem:[%s3 + $0x158] sm:$0xff]
  %v1803 = vld [vmem:[%s3 + $0x160] sm:$0xff]
  %v1804 = vld [vmem:[%s3 + $0x168] sm:$0xff]
  %v1805 = vld [vmem:[%s3 + $0x170] sm:$0xff]
  %v1806 = vld [vmem:[%s3 + $0x178] sm:$0xff]
  %v1807 = vld [vmem:[%s3 + $0x180] sm:$0xff]
  %v1808 = vld [vmem:[%s3 + $0x188] sm:$0xff]
  %v1809 = vld [vmem:[%s3 + $0x190] sm:$0xff]
  %v1810 = vld [vmem:[%s3 + $0x198] sm:$0xff]
  %v1811 = vld [vmem:[%s3 + $0x1a0] sm:$0xff]
  %v1812 = vld [vmem:[%s3 + $0x1a8] sm:$0xff]
  %v1813 = vld [vmem:[%s3 + $0x1b0] sm:$0xff]
  %v1814 = vld [vmem:[%s3 + $0x1b8] sm:$0xff]
  %v1815 = vld [vmem:[%s3 + $0x1c0] sm:$0xff]
  %v1816 = vld [vmem:[%s3 + $0x1c8] sm:$0xff]
  %v1817 = vld [vmem:[%s3 + $0x1d0] sm:$0xff]
  %v1818 = vld [vmem:[%s3 + $0x1d8] sm:$0xff]
  %v1819 = vld [vmem:[%s3 + $0x1e0] sm:$0xff]
  %v1820 = vld [vmem:[%s3 + $0x1e8] sm:$0xff]
  %v1821 = vld [vmem:[%s3 + $0x1f0] sm:$0xff]
  %v1822 = vld [vmem:[%s3 + $0x1f8] sm:$0xff]
  %1823 = vmatprep.subr.mxu0 %v1760
  %1824 = vmatpush1.msra.mxu0 %v1759
  %1825 = vmatprep.subr.mxu0 %v1764
  %1826 = vmatpush1.msra.mxu0 %v1763
  %1827 = vmatprep.subr.mxu0 %v1768
  %1828 = vmatpush1.msra.mxu0 %v1767
  %1829 = vmatprep.subr.mxu0 %v1772
  %1830 = vmatpush1.msra.mxu0 %v1771
  %1831 = vmatprep.subr.mxu0 %v1776
  %1832 = vmatpush1.msra.mxu0 %v1775
  %1833 = vmatprep.subr.mxu0 %v1780
  %1834 = vmatpush1.msra.mxu0 %v1779
  %1835 = vmatprep.subr.mxu0 %v1784
  %1836 = vmatpush1.msra.mxu0 %v1783
  %1837 = vmatprep.subr.mxu0 %v1788
  %1838 = vmatpush1.msra.mxu0 %v1787
  %1839 = vmatprep.subr.mxu0 %v1792
  %1840 = vmatpush1.msra.mxu0 %v1791
  %1841 = vmatprep.subr.mxu0 %v1796
  %1842 = vmatpush1.msra.mxu0 %v1795
  %1843 = vmatprep.subr.mxu0 %v1800
  %1844 = vmatpush1.msra.mxu0 %v1799
  %1845 = vmatprep.subr.mxu0 %v1804
  %1846 = vmatpush1.msra.mxu0 %v1803
  %1847 = vmatprep.subr.mxu0 %v1808
  %1848 = vmatpush1.msra.mxu0 %v1807
  %1849 = vmatprep.subr.mxu0 %v1812
  %1850 = vmatpush1.msra.mxu0 %v1811
  %1851 = vmatprep.subr.mxu0 %v1816
  %1852 = vmatpush1.msra.mxu0 %v1815
  %1853 = vmatprep.subr.mxu0 %v1820
  %1854 = vmatpush1.msra.mxu0 %v1819
  %1855 = vmatprep.subr.mxu0 0.0
  %1856 = vmatpush1.msra.mxu0 0.0
  %1857 = vmatprep.subr.mxu0 0.0
  %1858 = vmatpush1.msra.mxu0 0.0
  %1859 = vmatprep.subr.mxu0 0.0
  %1860 = vmatpush1.msra.mxu0 0.0
  %1861 = vmatprep.subr.mxu0 0.0
  %1862 = vmatpush1.msra.mxu0 0.0
  %1863 = vmatprep.subr.mxu0 0.0
  %1864 = vmatpush1.msra.mxu0 0.0
  %1865 = vmatprep.subr.mxu0 0.0
  %1866 = vmatpush1.msra.mxu0 0.0
  %1867 = vmatprep.subr.mxu0 0.0
  %1868 = vmatpush1.msra.mxu0 0.0
  %1869 = vmatprep.subr.mxu0 0.0
  %1870 = vmatpush1.msra.mxu0 0.0
  %1871 = vmatprep.subr.mxu0 0.0
  %1872 = vmatpush1.msra.mxu0 0.0
  %1873 = vmatprep.subr.mxu0 0.0
  %1874 = vmatpush1.msra.mxu0 0.0
  %1875 = vmatprep.subr.mxu0 0.0
  %1876 = vmatpush1.msra.mxu0 0.0
  %1877 = vmatprep.subr.mxu0 0.0
  %1878 = vmatpush1.msra.mxu0 0.0
  %1879 = vmatprep.subr.mxu0 0.0
  %1880 = vmatpush1.msra.mxu0 0.0
  %1881 = vmatprep.subr.mxu0 0.0
  %1882 = vmatpush1.msra.mxu0 0.0
  %1883 = vmatprep.subr.mxu0 0.0
  %1884 = vmatpush1.msra.mxu0 0.0
  %1885 = vmatprep.subr.mxu0 0.0
  %1886 = vmatpush1.msra.mxu0 0.0
  %1887 = vmatprep.mubr.f32.mxu0 0.0
  %1888 = vmatmul.mubr.f32.gmra.mrb[0].mxu0 %v1758
  %v1889 = vpop.f32.mrb[0].mxu0
  %v1890 = vadd.f32 0.0, %v1889
  %v1891 = vpop.f32.mrb[0].mxu0
  %v1892 = vadd.f32 0.0, %v1891
  %1893 = vdwg.mxu0
  %1894 = vmatprep.subr.mxu0 %v1762
  %1895 = vmatpush1.msra.mxu0 %v1761
  %1896 = vmatprep.subr.mxu0 %v1766
  %1897 = vmatpush1.msra.mxu0 %v1765
  %1898 = vmatprep.subr.mxu0 %v1770
  %1899 = vmatpush1.msra.mxu0 %v1769
  %1900 = vmatprep.subr.mxu0 %v1774
  %1901 = vmatpush1.msra.mxu0 %v1773
  %1902 = vmatprep.subr.mxu0 %v1778
  %1903 = vmatpush1.msra.mxu0 %v1777
  %1904 = vmatprep.subr.mxu0 %v1782
  %1905 = vmatpush1.msra.mxu0 %v1781
  %1906 = vmatprep.subr.mxu0 %v1786
  %1907 = vmatpush1.msra.mxu0 %v1785
  %1908 = vmatprep.subr.mxu0 %v1790
  %1909 = vmatpush1.msra.mxu0 %v1789
  %1910 = vmatprep.subr.mxu0 %v1794
  %1911 = vmatpush1.msra.mxu0 %v1793
  %1912 = vmatprep.subr.mxu0 %v1798
  %1913 = vmatpush1.msra.mxu0 %v1797
  %1914 = vmatprep.subr.mxu0 %v1802
  %1915 = vmatpush1.msra.mxu0 %v1801
  %1916 = vmatprep.subr.mxu0 %v1806
  %1917 = vmatpush1.msra.mxu0 %v1805
  %1918 = vmatprep.subr.mxu0 %v1810
  %1919 = vmatpush1.msra.mxu0 %v1809
  %1920 = vmatprep.subr.mxu0 %v1814
  %1921 = vmatpush1.msra.mxu0 %v1813
  %1922 = vmatprep.subr.mxu0 %v1818
  %1923 = vmatpush1.msra.mxu0 %v1817
  %1924 = vmatprep.subr.mxu0 %v1822
  %1925 = vmatpush1.msra.mxu0 %v1821
  %1926 = vmatprep.subr.mxu0 0.0
  %1927 = vmatpush1.msra.mxu0 0.0
  %1928 = vmatprep.subr.mxu0 0.0
  %1929 = vmatpush1.msra.mxu0 0.0
  %1930 = vmatprep.subr.mxu0 0.0
  %1931 = vmatpush1.msra.mxu0 0.0
  %1932 = vmatprep.subr.mxu0 0.0
  %1933 = vmatpush1.msra.mxu0 0.0
  %1934 = vmatprep.subr.mxu0 0.0
  %1935 = vmatpush1.msra.mxu0 0.0
  %1936 = vmatprep.subr.mxu0 0.0
  %1937 = vmatpush1.msra.mxu0 0.0
  %1938 = vmatprep.subr.mxu0 0.0
  %1939 = vmatpush1.msra.mxu0 0.0
  %1940 = vmatprep.subr.mxu0 0.0
  %1941 = vmatpush1.msra.mxu0 0.0
  %1942 = vmatprep.subr.mxu0 0.0
  %1943 = vmatpush1.msra.mxu0 0.0
  %1944 = vmatprep.subr.mxu0 0.0
  %1945 = vmatpush1.msra.mxu0 0.0
  %1946 = vmatprep.subr.mxu0 0.0
  %1947 = vmatpush1.msra.mxu0 0.0
  %1948 = vmatprep.subr.mxu0 0.0
  %1949 = vmatpush1.msra.mxu0 0.0
  %1950 = vmatprep.subr.mxu0 0.0
  %1951 = vmatpush1.msra.mxu0 0.0
  %1952 = vmatprep.subr.mxu0 0.0
  %1953 = vmatpush1.msra.mxu0 0.0
  %1954 = vmatprep.subr.mxu0 0.0
  %1955 = vmatpush1.msra.mxu0 0.0
  %1956 = vmatprep.subr.mxu0 0.0
  %1957 = vmatpush1.msra.mxu0 0.0
  %1958 = vmatprep.mubr.f32.mxu0 0.0
  %1959 = vmatmul.mubr.f32.gmra.mrb[0].mxu0 %v1758
  %v1960 = vpop.f32.mrb[0].mxu0
  %v1961 = vadd.f32 0.0, %v1960
  %v1962 = vpop.f32.mrb[0].mxu0
  %v1963 = vadd.f32 0.0, %v1962
  %1964 = vdwg.mxu0
  %v1965 = vadd.f32 %v1754, %v1890
  %v1966 = vadd.f32 %v1755, %v1892
  %v1967 = vadd.f32 %v1756, %v1961
  %v1968 = vadd.f32 %v1757, %v1963
  %v1969 = vxor.u32 %v1965, 2147483648
  %v1970 = vmul.f32 %v1969, 1.442695
  %v1971 = vpow.pop %v1970
  %v1972 = vadd.f32 %v1971, 1.0
  %v1973 = vrcp.pop %v1972
  %v1974 = vmul.f32 1.0, %v1973
  %v1975 = vxor.u32 %v1966, 2147483648
  %v1976 = vmul.f32 %v1975, 1.442695
  %v1977 = vpow.pop %v1976
  %v1978 = vadd.f32 %v1977, 1.0
  %v1979 = vrcp.pop %v1978
  %v1980 = vmul.f32 1.0, %v1979
  %v1981 = vtanh.pop %v1967
  %v1982 = vxor.u32 %v1968, 2147483648
  %v1983 = vmul.f32 %v1982, 1.442695
  %v1984 = vpow.pop %v1983
  %v1985 = vadd.f32 %v1984, 1.0
  %v1986 = vrcp.pop %v1985
  %v1987 = vmul.f32 1.0, %v1986
  %v1988 = vld [vmem:[#allocation3] sm:$0xff]
  %v1989 = vmul.f32 %v1980, %v1988
  %v1990 = vmul.f32 %v1974, %v1981
  %v1991 = vadd.f32 %v1989, %v1990
  %v1992 = vtanh.pop %v1991
  %v1993 = vmul.f32 %v1987, %v1992
  %1994 = vst [vmem:[#allocation3] sm:$0xff] %v1991
  %1995 = vst [vmem:[#allocation2] sm:$0xff] %v1993
  %s1996 = scalar_lea.vmem %s4, 56
  %1997 = vst [vmem:[%s1996] sm:$0xff] %v1993
  %s1998 = scalar_lea.vmem %s5, 56
  %1999 = vst [vmem:[%s1998] sm:$0xff] %v1991
  // Predicated region
  $region22: #{cond_lstm_forward.1} parent=0 // pred_check
    _
  $region23: #{cond_lstm_forward.1} parent=0 // pred_check_branch
    %2001 = sbr.rel (0) target = $region25
  $region24: #{cond_lstm_forward.1} parent=0 // pred_region
    _
  $region25: #{cond_lstm_forward.1} parent=0 // pred_fallthru
    _
  // Predicated region
  $region26: #{cond_lstm_forward.1} parent=0 // pred_check
    _
  $region27: #{cond_lstm_forward.1} parent=0 // pred_check_branch
    %2003 = sbr.rel (0) target = $region29
  $region28: #{cond_lstm_forward.1} parent=0 // pred_region
    _
  $region29: #{cond_lstm_forward.1} parent=0 // pred_fallthru
    _
  // Predicated region
  $region30: #{cond_lstm_forward.1} parent=0 // pred_check
    _
  $region31: #{cond_lstm_forward.1} parent=0 // pred_check_branch
    %2005 = sbr.rel (0) target = $region33
  $region32: #{cond_lstm_forward.1} parent=0 // pred_region
    _
  $region33: #{cond_lstm_forward.1} parent=0 // pred_fallthru
    _
  // Predicated region
  $region34: #{cond_lstm_forward.1} parent=0 // pred_check
    _
  $region35: #{cond_lstm_forward.1} parent=0 // pred_check_branch
    %2007 = sbr.rel (0) target = $region37
  $region36: #{cond_lstm_forward.1} parent=0 // pred_region
    _
  $region37: #{cond_lstm_forward.1} parent=0 // pred_fallthru
    _

</llo_original>
